<compile_context>
chip_gen: v7x
topology: tpu7x:2x2x1
jax: 0.10.0
libtpu: 0.0.40
codegen_flags: <defaults>
</compile_context>

<pallas_src>
import functools

import jax
import jax.numpy as jnp
from jax.experimental import pallas as pl
from jax.experimental.pallas import tpu as pltpu


# ----------------------------- Pallas kernel ------------------------------- #

def _dssm_fused_kernel(xu_ref, xi_ref,
                       wu1_ref, bu1_ref, wu2_ref, bu2_ref,
                       wi1_ref, bi1_ref, wi2_ref, bi2_ref,
                       sim_ref, u_ref, v_ref, *, n_heads, h2, l2_normalize):
    """One grid step = one batch tile: all heads of both towers + similarity."""
    xu = xu_ref[...].astype(jnp.float32)
    xi = xi_ref[...].astype(jnp.float32)

    def tower(x, w1_ref, b1_ref, w2_ref, b2_ref, o):
        h = jnp.dot(x, w1_ref[o], preferred_element_type=jnp.float32)
        h = jnp.maximum(h + b1_ref[o], 0.0)       # Linear -> Dropout(0) -> ReLU
        h = jnp.dot(h, w2_ref[o], preferred_element_type=jnp.float32)
        h = jnp.maximum(h + b2_ref[o], 0.0)
        return h                                  # [tb, H2] f32

    sims = []
    for o in range(n_heads):                      # static unroll over output heads
        u = tower(xu, wu1_ref, bu1_ref, wu2_ref, bu2_ref, o)
        v = tower(xi, wi1_ref, bi1_ref, wi2_ref, bi2_ref, o)
        if l2_normalize:
            # eps-clamped (F.normalize-style) so all-zero ReLU rows don't give inf/NaN.
            u = u * jax.lax.rsqrt(jnp.maximum(jnp.sum(u * u, -1, keepdims=True), 1e-12))
            v = v * jax.lax.rsqrt(jnp.maximum(jnp.sum(v * v, -1, keepdims=True), 1e-12))
        # Lane-dense bf16 stores straight into the final [B, O*H2] layout.
        u_ref[:, o * h2:(o + 1) * h2] = u.astype(u_ref.dtype)
        v_ref[:, o * h2:(o + 1) * h2] = v.astype(v_ref.dtype)
        sims.append(jnp.sum(u * v, axis=-1, keepdims=True))
    sim_ref[...] = jnp.concatenate(sims, axis=-1)  # [tb, O]


# ------------------------------ Kernel wrapper ------------------------------ #

def _round_up(x, m):
    return ((x + m - 1) // m) * m


def dssm_fused(xu, xi, uw1, ub1, uw2, ub2, iw1, ib1, iw2, ib2,
               *, l2_normalize, tile_b=512, out_dtype=jnp.bfloat16):
    """Fused towers + similarity.

    xu:[B,Du], xi:[B,Di] float; weights stacked per head: w1:[O,d_in,H1], b1:[O,1,H1],
    w2:[O,H1,H2], b2:[O,1,H2].  Returns (sim [B,O] f32, u [B,O,H2], v [B,O,H2]).
    """
    B, Du = xu.shape
    Di = xi.shape[1]
    O, _, H1 = uw1.shape
    H2 = uw2.shape[2]

    # If the feature concat was zero-padded to a lane multiple, zero-pad the matching
    # W1 rows (tiny, weight-only op; mathematically an identity).
    def pad_rows(w, d_in):
        assert w.shape[1] <= d_in
        if w.shape[1] < d_in:
            w = jnp.pad(w, ((0, 0), (0, d_in - w.shape[1]), (0, 0)))
        return w

    uw1 = pad_rows(uw1, Du)
    iw1 = pad_rows(iw1, Di)

    # Batch tile: big (fewer, fatter DMAs) but keep >= 2 grid steps when possible so
    # both v7x TensorCores get work.  8-sublane aligned (f32).
    sub = 8
    tb = min(tile_b, _round_up(B, sub))
    if B > sub:
        tb = min(tb, _round_up((B + 1) // 2, sub))
    Bp = _round_up(B, tb)
    if Bp != B:  # only pad when the tile does not divide B
        xu = jnp.pad(xu, ((0, Bp - B), (0, 0)))
        xi = jnp.pad(xi, ((0, Bp - B), (0, 0)))

    grid = (Bp // tb,)

    def resident(shape):
        # Constant block index -> weights DMA'd once and stay resident in VMEM.
        return pl.BlockSpec(shape, lambda b: (0,) * len(shape))

    kernel = functools.partial(_dssm_fused_kernel, n_heads=O, h2=H2,
                               l2_normalize=l2_normalize)
    sim, u, v = pl.pallas_call(
        kernel,
        out_shape=(
            jax.ShapeDtypeStruct((Bp, O), jnp.float32),        # similarities
            jax.ShapeDtypeStruct((Bp, O * H2), out_dtype),     # user tower output
            jax.ShapeDtypeStruct((Bp, O * H2), out_dtype),     # item tower output
        ),
        grid_spec=pltpu.PrefetchScalarGridSpec(
            num_scalar_prefetch=0,
            grid=grid,
            in_specs=[
                pl.BlockSpec((tb, Du), lambda b: (b, 0)),
                pl.BlockSpec((tb, Di), lambda b: (b, 0)),
                resident((O, Du, H1)), resident((O, 1, H1)),
                resident((O, H1, H2)), resident((O, 1, H2)),
                resident((O, Di, H1)), resident((O, 1, H1)),
                resident((O, H1, H2)), resident((O, 1, H2)),
            ],
            out_specs=[
                pl.BlockSpec((tb, O), lambda b: (b, 0)),
                pl.BlockSpec((tb, O * H2), lambda b: (b, 0)),
                pl.BlockSpec((tb, O * H2), lambda b: (b, 0)),
            ],
        ),
        compiler_params=pltpu.CompilerParams(
            dimension_semantics=("parallel",)),
    )(xu, xi, uw1, ub1, uw2, ub2, iw1, ib1, iw2, ib2)

    similarities = sim[:B]                      # [B, O]
    user_embeddings = u[:B].reshape(B, O, H2)   # free contiguous view of [B, O*H2]
    item_embeddings = v[:B].reshape(B, O, H2)
    return similarities, user_embeddings, item_embeddings


# ------------------------------ Model wrapper ------------------------------ #

def embedding_lookup(indices, tables):
    """indices: [B, F] int32; tables: list of F arrays [vocab, dimensions]."""
    outs = [tab[indices[:, f]] for f, tab in enumerate(tables)]
    return jnp.concatenate(outs, axis=1)  # [B, F * dimensions]


def _concat_features(emb, pretrain, pad_to=128):
    """Concat embeddings + pretrain and zero-pad the feature dim to a lane multiple
    (fused into the concat; padding the MXU contraction dim is a math identity)."""
    parts = [emb]
    if pretrain is not None:
        parts.append(pretrain.astype(emb.dtype))
    d = sum(p.shape[1] for p in parts)
    pad = (-d) % pad_to
    if pad:
        parts.append(jnp.zeros((emb.shape[0], pad), emb.dtype))
    return jnp.concatenate(parts, axis=1)


def dssm_forward(user_idx, item_idx, user_pretrain, item_pretrain, params,
                 l2_normalization, *, tile_b=512, out_dtype=jnp.bfloat16):
    xu = _concat_features(embedding_lookup(user_idx, params["user_emb_tables"]),
                          user_pretrain)
    xi = _concat_features(embedding_lookup(item_idx, params["item_emb_tables"]),
                          item_pretrain)

    # Mirror the PyTorch string-flag quirk: `self.l2_normalization.lower() == 'true'`.
    l2 = str(l2_normalization).lower() == "true"

    return dssm_fused(
        xu, xi,
        params["user_w1"], params["user_b1"], params["user_w2"], params["user_b2"],
        params["item_w1"], params["item_b1"], params["item_w2"], params["item_b2"],
        l2_normalize=l2, tile_b=tile_b, out_dtype=out_dtype)


# ------------------------------ Param builder ------------------------------ #

def build_params(key, *, n_user_fields, n_item_fields, vocab, dimensions,
                 user_pretrain_dim, item_pretrain_dim, dnn_size, output):
    assert len(dnn_size) == 2, "kernel fuses exactly two Linear->ReLU blocks"
    h1, h2 = dnn_size
    keys = iter(jax.random.split(key, 64))

    def emb_tables(n_fields):
        return [0.05 * jax.random.normal(next(keys), (vocab, dimensions), jnp.float32)
                for _ in range(n_fields)]

    def heads(d_in):
        # Stacked per-head weights [O, ...].  Biases are kept as [O, 1, d] so they map
        # onto the (sublane, lane) layout in-kernel; a rank-1 nn.Linear checkpoint bias
        # must be reshaped to this layout before the call.
        k1, k2, k3, k4 = (next(keys) for _ in range(4))
        w1 = (1.0 / jnp.sqrt(d_in)) * jax.random.normal(k1, (output, d_in, h1), jnp.float32)
        b1 = 0.01 * jax.random.normal(k2, (output, 1, h1), jnp.float32)
        w2 = (1.0 / jnp.sqrt(h1)) * jax.random.normal(k3, (output, h1, h2), jnp.float32)
        b2 = 0.01 * jax.random.normal(k4, (output, 1, h2), jnp.float32)
        return w1, b1, w2, b2

    user_in = n_user_fields * dimensions + user_pretrain_dim
    item_in = n_item_fields * dimensions + item_pretrain_dim
    uw1, ub1, uw2, ub2 = heads(user_in)
    iw1, ib1, iw2, ib2 = heads(item_in)
    return {
        "user_emb_tables": emb_tables(n_user_fields),
        "item_emb_tables": emb_tables(n_item_fields),
        "user_w1": uw1, "user_b1": ub1, "user_w2": uw2, "user_b2": ub2,
        "item_w1": iw1, "item_b1": ib1, "item_w2": iw2, "item_b2": ib2,
    }


# --------------------------- Pure-JAX reference ----------------------------- #

def dssm_reference(xu, xi, params, l2):
    def tower(x, w1, b1, w2, b2):
        h = jnp.einsum("bd,odh->boh", x.astype(jnp.float32), w1,
                       preferred_element_type=jnp.float32)
        h = jnp.maximum(h + jnp.swapaxes(b1, 0, 1), 0.0)
        h = jnp.einsum("boh,ohk->bok", h, w2, preferred_element_type=jnp.float32)
        h = jnp.maximum(h + jnp.swapaxes(b2, 0, 1), 0.0)
        return h  # [B, O, H2]

    u = tower(xu, params["user_w1"], params["user_b1"], params["user_w2"], params["user_b2"])
    v = tower(xi, params["item_w1"], params["item_b1"], params["item_w2"], params["item_b2"])
    if l2:
        u = u * jax.lax.rsqrt(jnp.maximum(jnp.sum(u * u, -1, keepdims=True), 1e-12))
        v = v * jax.lax.rsqrt(jnp.maximum(jnp.sum(v * v, -1, keepdims=True), 1e-12))
    sim = jnp.sum(u * v, axis=-1)
    return sim, u, v


# ---------------------------------- Main ----------------------------------- #

if __name__ == "__main__":
    key = jax.random.PRNGKey(0)
    k_param, k_uid, k_iid, k_upre, k_ipre = jax.random.split(key, 5)

    B = 64                  # small batch; still exercises >= 2 batch-tile grid steps
    dimensions = 16         # per-field embedding dim
    n_user_fields = 4
    n_item_fields = 3
    vocab = 32
    user_pretrain_dim = 32
    item_pretrain_dim = 32
    dnn_size = (256, 128)   # module default; lane-aligned hidden dims
    output = 2              # exercises the in-kernel head loop
    l2_normalization = "False"   # module stores this flag as a string

    params = build_params(
        k_param,
        n_user_fields=n_user_fields, n_item_fields=n_item_fields,
        vocab=vocab, dimensions=dimensions,
        user_pretrain_dim=user_pretrain_dim, item_pretrain_dim=item_pretrain_dim,
        dnn_size=dnn_size, output=output,
    )

    user_idx = jax.random.randint(k_uid, (B, n_user_fields), 0, vocab, jnp.int32)
    item_idx = jax.random.randint(k_iid, (B, n_item_fields), 0, vocab, jnp.int32)
    user_pretrain = jax.random.normal(k_upre, (B, user_pretrain_dim), jnp.float32)
    item_pretrain = jax.random.normal(k_ipre, (B, item_pretrain_dim), jnp.float32)

    fwd = jax.jit(functools.partial(dssm_forward, l2_normalization=l2_normalization))
    similarities, user_embeddings, item_embeddings = fwd(
        user_idx, item_idx, user_pretrain, item_pretrain, params)
    jax.block_until_ready((similarities, user_embeddings, item_embeddings))

    assert similarities.shape == (B, output)
    assert user_embeddings.shape == (B, output, dnn_size[-1])
    assert item_embeddings.shape == (B, output, dnn_size[-1])

    # Numerics check against a pure-JAX f32 reference (embeddings are returned bf16).
    xu = jnp.concatenate(
        [embedding_lookup(user_idx, params["user_emb_tables"]), user_pretrain], axis=1)
    xi = jnp.concatenate(
        [embedding_lookup(item_idx, params["item_emb_tables"]), item_pretrain], axis=1)
    sim_exp, u_exp, v_exp = dssm_reference(xu, xi, params, l2=False)
    assert jnp.allclose(similarities, sim_exp, atol=2e-2, rtol=2e-2)
    assert jnp.allclose(user_embeddings.astype(jnp.float32), u_exp, atol=2e-2, rtol=2e-2)
    assert jnp.allclose(item_embeddings.astype(jnp.float32), v_exp, atol=2e-2, rtol=2e-2)

    # Also exercise the (eps-clamped) L2-normalized path.
    sim_n, u_n, v_n = dssm_forward(user_idx, item_idx, user_pretrain, item_pretrain,
                                   params, "true")
    jax.block_until_ready((sim_n, u_n, v_n))
    assert bool(jnp.all(jnp.isfinite(sim_n)))
    assert bool(jnp.all(jnp.abs(sim_n) <= 1.0 + 1e-3))  # cosine similarity bound

    print("KERNEL_OK")
</pallas_src>

<mosaic_0001>
module attributes {stable_mosaic.version = 11 : i64} {
  func.func @_dssm_fused_kernel(%arg0: i32, %arg1: memref<32x128xf32, #tpu.memory_space<vmem>>, %arg2: memref<32x128xf32, #tpu.memory_space<vmem>>, %arg3: memref<2x128x256xf32, #tpu.memory_space<vmem>>, %arg4: memref<2x1x256xf32, #tpu.memory_space<vmem>>, %arg5: memref<2x256x128xf32, #tpu.memory_space<vmem>>, %arg6: memref<2x1x128xf32, #tpu.memory_space<vmem>>, %arg7: memref<2x128x256xf32, #tpu.memory_space<vmem>>, %arg8: memref<2x1x256xf32, #tpu.memory_space<vmem>>, %arg9: memref<2x256x128xf32, #tpu.memory_space<vmem>>, %arg10: memref<2x1x128xf32, #tpu.memory_space<vmem>>, %arg11: memref<32x2xf32, #tpu.memory_space<vmem>>, %arg12: memref<32x256xbf16, #tpu.memory_space<vmem>>, %arg13: memref<32x256xbf16, #tpu.memory_space<vmem>>) attributes {dimension_semantics = [#tpu.dimension_semantics<parallel>], iteration_bounds = array<i64: 2>, scalar_prefetch = 0 : i64, scratch_operands = 0 : i64, tpu.core_type = #tpu.core_type<tc>, window_params = [{transform_indices = @transform_0, window_bounds = array<i64: 32, 128>}, {transform_indices = @transform_1, window_bounds = array<i64: 32, 128>}, {pipeline_mode = #tpu.pipeline_mode<synchronous>, transform_indices = @transform_2, window_bounds = array<i64: 2, 128, 256>}, {pipeline_mode = #tpu.pipeline_mode<synchronous>, transform_indices = @transform_3, window_bounds = array<i64: 2, 1, 256>}, {pipeline_mode = #tpu.pipeline_mode<synchronous>, transform_indices = @transform_4, window_bounds = array<i64: 2, 256, 128>}, {pipeline_mode = #tpu.pipeline_mode<synchronous>, transform_indices = @transform_5, window_bounds = array<i64: 2, 1, 128>}, {pipeline_mode = #tpu.pipeline_mode<synchronous>, transform_indices = @transform_6, window_bounds = array<i64: 2, 128, 256>}, {pipeline_mode = #tpu.pipeline_mode<synchronous>, transform_indices = @transform_7, window_bounds = array<i64: 2, 1, 256>}, {pipeline_mode = #tpu.pipeline_mode<synchronous>, transform_indices = @transform_8, window_bounds = array<i64: 2, 256, 128>}, {pipeline_mode = #tpu.pipeline_mode<synchronous>, transform_indices = @transform_9, window_bounds = array<i64: 2, 1, 128>}, {transform_indices = @transform_10, window_bounds = array<i64: 32, 2>}, {transform_indices = @transform_11, window_bounds = array<i64: 32, 256>}, {transform_indices = @transform_12, window_bounds = array<i64: 32, 256>}]} {
    %c0 = arith.constant 0 : index
    %c0_0 = arith.constant 0 : index
    %0 = vector.load %arg1[%c0, %c0_0] : memref<32x128xf32, #tpu.memory_space<vmem>>, vector<32x128xf32>
    %c0_1 = arith.constant 0 : index
    %c0_2 = arith.constant 0 : index
    %1 = vector.load %arg2[%c0_1, %c0_2] : memref<32x128xf32, #tpu.memory_space<vmem>>, vector<32x128xf32>
    %c0_3 = arith.constant 0 : index
    %c0_4 = arith.constant 0 : index
    %c0_5 = arith.constant 0 : index
    %2 = vector.load %arg3[%c0_3, %c0_4, %c0_5] : memref<2x128x256xf32, #tpu.memory_space<vmem>>, vector<1x128x256xf32>
    %3 = vector.shape_cast %2 : vector<1x128x256xf32> to vector<128x256xf32>
    %cst = arith.constant dense<0.000000e+00> : vector<32x256xf32>
    %4 = tpu.matmul %0, %3, %cst {dimension_numbers = #tpu.dot_dimension_numbers<[1], [0], [0], [1], [0, 0, 1, 1], [], []>} : vector<32x128xf32>, vector<128x256xf32>, vector<32x256xf32> -> vector<32x256xf32>
    %c0_6 = arith.constant 0 : index
    %c0_7 = arith.constant 0 : index
    %c0_8 = arith.constant 0 : index
    %5 = vector.load %arg4[%c0_6, %c0_7, %c0_8] : memref<2x1x256xf32, #tpu.memory_space<vmem>>, vector<1x1x256xf32>
    %6 = vector.shape_cast %5 : vector<1x1x256xf32> to vector<1x256xf32>
    %7 = vector.broadcast %6 : vector<1x256xf32> to vector<32x256xf32>
    %8 = arith.addf %4, %7 : vector<32x256xf32>
    %cst_9 = arith.constant 0.000000e+00 : f32
    %9 = vector.broadcast %cst_9 : f32 to vector<32x256xf32>
    %10 = arith.maximumf %8, %9 : vector<32x256xf32>
    %c0_10 = arith.constant 0 : index
    %c0_11 = arith.constant 0 : index
    %c0_12 = arith.constant 0 : index
    %11 = vector.load %arg5[%c0_10, %c0_11, %c0_12] : memref<2x256x128xf32, #tpu.memory_space<vmem>>, vector<1x256x128xf32>
    %12 = vector.shape_cast %11 : vector<1x256x128xf32> to vector<256x128xf32>
    %cst_13 = arith.constant dense<0.000000e+00> : vector<32x128xf32>
    %13 = tpu.matmul %10, %12, %cst_13 {dimension_numbers = #tpu.dot_dimension_numbers<[1], [0], [0], [1], [0, 0, 1, 1], [], []>} : vector<32x256xf32>, vector<256x128xf32>, vector<32x128xf32> -> vector<32x128xf32>
    %c0_14 = arith.constant 0 : index
    %c0_15 = arith.constant 0 : index
    %c0_16 = arith.constant 0 : index
    %14 = vector.load %arg6[%c0_14, %c0_15, %c0_16] : memref<2x1x128xf32, #tpu.memory_space<vmem>>, vector<1x1x128xf32>
    %15 = vector.shape_cast %14 : vector<1x1x128xf32> to vector<1x128xf32>
    %16 = vector.broadcast %15 : vector<1x128xf32> to vector<32x128xf32>
    %17 = arith.addf %13, %16 : vector<32x128xf32>
    %cst_17 = arith.constant 0.000000e+00 : f32
    %18 = vector.broadcast %cst_17 : f32 to vector<32x128xf32>
    %19 = arith.maximumf %17, %18 : vector<32x128xf32>
    %c0_18 = arith.constant 0 : index
    %c0_19 = arith.constant 0 : index
    %c0_20 = arith.constant 0 : index
    %20 = vector.load %arg7[%c0_18, %c0_19, %c0_20] : memref<2x128x256xf32, #tpu.memory_space<vmem>>, vector<1x128x256xf32>
    %21 = vector.shape_cast %20 : vector<1x128x256xf32> to vector<128x256xf32>
    %cst_21 = arith.constant dense<0.000000e+00> : vector<32x256xf32>
    %22 = tpu.matmul %1, %21, %cst_21 {dimension_numbers = #tpu.dot_dimension_numbers<[1], [0], [0], [1], [0, 0, 1, 1], [], []>} : vector<32x128xf32>, vector<128x256xf32>, vector<32x256xf32> -> vector<32x256xf32>
    %c0_22 = arith.constant 0 : index
    %c0_23 = arith.constant 0 : index
    %c0_24 = arith.constant 0 : index
    %23 = vector.load %arg8[%c0_22, %c0_23, %c0_24] : memref<2x1x256xf32, #tpu.memory_space<vmem>>, vector<1x1x256xf32>
    %24 = vector.shape_cast %23 : vector<1x1x256xf32> to vector<1x256xf32>
    %25 = vector.broadcast %24 : vector<1x256xf32> to vector<32x256xf32>
    %26 = arith.addf %22, %25 : vector<32x256xf32>
    %cst_25 = arith.constant 0.000000e+00 : f32
    %27 = vector.broadcast %cst_25 : f32 to vector<32x256xf32>
    %28 = arith.maximumf %26, %27 : vector<32x256xf32>
    %c0_26 = arith.constant 0 : index
    %c0_27 = arith.constant 0 : index
    %c0_28 = arith.constant 0 : index
    %29 = vector.load %arg9[%c0_26, %c0_27, %c0_28] : memref<2x256x128xf32, #tpu.memory_space<vmem>>, vector<1x256x128xf32>
    %30 = vector.shape_cast %29 : vector<1x256x128xf32> to vector<256x128xf32>
    %cst_29 = arith.constant dense<0.000000e+00> : vector<32x128xf32>
    %31 = tpu.matmul %28, %30, %cst_29 {dimension_numbers = #tpu.dot_dimension_numbers<[1], [0], [0], [1], [0, 0, 1, 1], [], []>} : vector<32x256xf32>, vector<256x128xf32>, vector<32x128xf32> -> vector<32x128xf32>
    %c0_30 = arith.constant 0 : index
    %c0_31 = arith.constant 0 : index
    %c0_32 = arith.constant 0 : index
    %32 = vector.load %arg10[%c0_30, %c0_31, %c0_32] : memref<2x1x128xf32, #tpu.memory_space<vmem>>, vector<1x1x128xf32>
    %33 = vector.shape_cast %32 : vector<1x1x128xf32> to vector<1x128xf32>
    %34 = vector.broadcast %33 : vector<1x128xf32> to vector<32x128xf32>
    %35 = arith.addf %31, %34 : vector<32x128xf32>
    %cst_33 = arith.constant 0.000000e+00 : f32
    %36 = vector.broadcast %cst_33 : f32 to vector<32x128xf32>
    %37 = arith.maximumf %35, %36 : vector<32x128xf32>
    %38 = arith.truncf %19 : vector<32x128xf32> to vector<32x128xbf16>
    %c0_34 = arith.constant 0 : index
    %c0_35 = arith.constant 0 : index
    %39 = vector.load %arg12[%c0_34, %c0_35] : memref<32x256xbf16, #tpu.memory_space<vmem>>, vector<32x128xbf16>
    tpu.vector_store %arg12[%c0_34, %c0_35], %38 {strides = array<i32>} : memref<32x256xbf16, #tpu.memory_space<vmem>>, vector<32x128xbf16>,
    %40 = arith.truncf %37 : vector<32x128xf32> to vector<32x128xbf16>
    %c0_36 = arith.constant 0 : index
    %c0_37 = arith.constant 0 : index
    %41 = vector.load %arg13[%c0_36, %c0_37] : memref<32x256xbf16, #tpu.memory_space<vmem>>, vector<32x128xbf16>
    tpu.vector_store %arg13[%c0_36, %c0_37], %40 {strides = array<i32>} : memref<32x256xbf16, #tpu.memory_space<vmem>>, vector<32x128xbf16>,
    %42 = arith.mulf %19, %37 : vector<32x128xf32>
    %cst_38 = arith.constant dense<0.000000e+00> : vector<32xf32>
    %43 = vector.multi_reduction <add>, %42, %cst_38 [1] : vector<32x128xf32> to vector<32xf32>
    %44 = vector.shape_cast %43 : vector<32xf32> to vector<32x1xf32>
    %c1 = arith.constant 1 : index
    %c0_39 = arith.constant 0 : index
    %c0_40 = arith.constant 0 : index
    %45 = vector.load %arg3[%c1, %c0_39, %c0_40] : memref<2x128x256xf32, #tpu.memory_space<vmem>>, vector<1x128x256xf32>
    %46 = vector.shape_cast %45 : vector<1x128x256xf32> to vector<128x256xf32>
    %cst_41 = arith.constant dense<0.000000e+00> : vector<32x256xf32>
    %47 = tpu.matmul %0, %46, %cst_41 {dimension_numbers = #tpu.dot_dimension_numbers<[1], [0], [0], [1], [0, 0, 1, 1], [], []>} : vector<32x128xf32>, vector<128x256xf32>, vector<32x256xf32> -> vector<32x256xf32>
    %c1_42 = arith.constant 1 : index
    %c0_43 = arith.constant 0 : index
    %c0_44 = arith.constant 0 : index
    %48 = vector.load %arg4[%c1_42, %c0_43, %c0_44] : memref<2x1x256xf32, #tpu.memory_space<vmem>>, vector<1x1x256xf32>
    %49 = vector.shape_cast %48 : vector<1x1x256xf32> to vector<1x256xf32>
    %50 = vector.broadcast %49 : vector<1x256xf32> to vector<32x256xf32>
    %51 = arith.addf %47, %50 : vector<32x256xf32>
    %cst_45 = arith.constant 0.000000e+00 : f32
    %52 = vector.broadcast %cst_45 : f32 to vector<32x256xf32>
    %53 = arith.maximumf %51, %52 : vector<32x256xf32>
    %c1_46 = arith.constant 1 : index
    %c0_47 = arith.constant 0 : index
    %c0_48 = arith.constant 0 : index
    %54 = vector.load %arg5[%c1_46, %c0_47, %c0_48] : memref<2x256x128xf32, #tpu.memory_space<vmem>>, vector<1x256x128xf32>
    %55 = vector.shape_cast %54 : vector<1x256x128xf32> to vector<256x128xf32>
    %cst_49 = arith.constant dense<0.000000e+00> : vector<32x128xf32>
    %56 = tpu.matmul %53, %55, %cst_49 {dimension_numbers = #tpu.dot_dimension_numbers<[1], [0], [0], [1], [0, 0, 1, 1], [], []>} : vector<32x256xf32>, vector<256x128xf32>, vector<32x128xf32> -> vector<32x128xf32>
    %c1_50 = arith.constant 1 : index
    %c0_51 = arith.constant 0 : index
    %c0_52 = arith.constant 0 : index
    %57 = vector.load %arg6[%c1_50, %c0_51, %c0_52] : memref<2x1x128xf32, #tpu.memory_space<vmem>>, vector<1x1x128xf32>
    %58 = vector.shape_cast %57 : vector<1x1x128xf32> to vector<1x128xf32>
    %59 = vector.broadcast %58 : vector<1x128xf32> to vector<32x128xf32>
    %60 = arith.addf %56, %59 : vector<32x128xf32>
    %cst_53 = arith.constant 0.000000e+00 : f32
    %61 = vector.broadcast %cst_53 : f32 to vector<32x128xf32>
    %62 = arith.maximumf %60, %61 : vector<32x128xf32>
    %c1_54 = arith.constant 1 : index
    %c0_55 = arith.constant 0 : index
    %c0_56 = arith.constant 0 : index
    %63 = vector.load %arg7[%c1_54, %c0_55, %c0_56] : memref<2x128x256xf32, #tpu.memory_space<vmem>>, vector<1x128x256xf32>
    %64 = vector.shape_cast %63 : vector<1x128x256xf32> to vector<128x256xf32>
    %cst_57 = arith.constant dense<0.000000e+00> : vector<32x256xf32>
    %65 = tpu.matmul %1, %64, %cst_57 {dimension_numbers = #tpu.dot_dimension_numbers<[1], [0], [0], [1], [0, 0, 1, 1], [], []>} : vector<32x128xf32>, vector<128x256xf32>, vector<32x256xf32> -> vector<32x256xf32>
    %c1_58 = arith.constant 1 : index
    %c0_59 = arith.constant 0 : index
    %c0_60 = arith.constant 0 : index
    %66 = vector.load %arg8[%c1_58, %c0_59, %c0_60] : memref<2x1x256xf32, #tpu.memory_space<vmem>>, vector<1x1x256xf32>
    %67 = vector.shape_cast %66 : vector<1x1x256xf32> to vector<1x256xf32>
    %68 = vector.broadcast %67 : vector<1x256xf32> to vector<32x256xf32>
    %69 = arith.addf %65, %68 : vector<32x256xf32>
    %cst_61 = arith.constant 0.000000e+00 : f32
    %70 = vector.broadcast %cst_61 : f32 to vector<32x256xf32>
    %71 = arith.maximumf %69, %70 : vector<32x256xf32>
    %c1_62 = arith.constant 1 : index
    %c0_63 = arith.constant 0 : index
    %c0_64 = arith.constant 0 : index
    %72 = vector.load %arg9[%c1_62, %c0_63, %c0_64] : memref<2x256x128xf32, #tpu.memory_space<vmem>>, vector<1x256x128xf32>
    %73 = vector.shape_cast %72 : vector<1x256x128xf32> to vector<256x128xf32>
    %cst_65 = arith.constant dense<0.000000e+00> : vector<32x128xf32>
    %74 = tpu.matmul %71, %73, %cst_65 {dimension_numbers = #tpu.dot_dimension_numbers<[1], [0], [0], [1], [0, 0, 1, 1], [], []>} : vector<32x256xf32>, vector<256x128xf32>, vector<32x128xf32> -> vector<32x128xf32>
    %c1_66 = arith.constant 1 : index
    %c0_67 = arith.constant 0 : index
    %c0_68 = arith.constant 0 : index
    %75 = vector.load %arg10[%c1_66, %c0_67, %c0_68] : memref<2x1x128xf32, #tpu.memory_space<vmem>>, vector<1x1x128xf32>
    %76 = vector.shape_cast %75 : vector<1x1x128xf32> to vector<1x128xf32>
    %77 = vector.broadcast %76 : vector<1x128xf32> to vector<32x128xf32>
    %78 = arith.addf %74, %77 : vector<32x128xf32>
    %cst_69 = arith.constant 0.000000e+00 : f32
    %79 = vector.broadcast %cst_69 : f32 to vector<32x128xf32>
    %80 = arith.maximumf %78, %79 : vector<32x128xf32>
    %81 = arith.truncf %62 : vector<32x128xf32> to vector<32x128xbf16>
    %c0_70 = arith.constant 0 : index
    %c128 = arith.constant 128 : index
    %82 = vector.load %arg12[%c0_70, %c128] : memref<32x256xbf16, #tpu.memory_space<vmem>>, vector<32x128xbf16>
    tpu.vector_store %arg12[%c0_70, %c128], %81 {strides = array<i32>} : memref<32x256xbf16, #tpu.memory_space<vmem>>, vector<32x128xbf16>,
    %83 = arith.truncf %80 : vector<32x128xf32> to vector<32x128xbf16>
    %c0_71 = arith.constant 0 : index
    %c128_72 = arith.constant 128 : index
    %84 = vector.load %arg13[%c0_71, %c128_72] : memref<32x256xbf16, #tpu.memory_space<vmem>>, vector<32x128xbf16>
    tpu.vector_store %arg13[%c0_71, %c128_72], %83 {strides = array<i32>} : memref<32x256xbf16, #tpu.memory_space<vmem>>, vector<32x128xbf16>,
    %85 = arith.mulf %62, %80 : vector<32x128xf32>
    %cst_73 = arith.constant dense<0.000000e+00> : vector<32xf32>
    %86 = vector.multi_reduction <add>, %85, %cst_73 [1] : vector<32x128xf32> to vector<32xf32>
    %87 = vector.shape_cast %86 : vector<32xf32> to vector<32x1xf32>
    %88 = tpu.concatenate %44, %87 in 1 : vector<32x1xf32>, vector<32x1xf32> -> vector<32x2xf32>
    %c0_74 = arith.constant 0 : index
    %c0_75 = arith.constant 0 : index
    %89 = vector.load %arg11[%c0_74, %c0_75] : memref<32x2xf32, #tpu.memory_space<vmem>>, vector<32x2xf32>
    tpu.vector_store %arg11[%c0_74, %c0_75], %88 {strides = array<i32>} : memref<32x2xf32, #tpu.memory_space<vmem>>, vector<32x2xf32>,
    return
  }
  func.func @transform_0(%arg0: i32) -> (i32, i32) {
    %c0_i32 = arith.constant 0 : i32
    %c0_i32_0 = arith.constant 0 : i32
    return %arg0, %c0_i32 : i32, i32
  }
  func.func @transform_1(%arg0: i32) -> (i32, i32) {
    %c0_i32 = arith.constant 0 : i32
    %c0_i32_0 = arith.constant 0 : i32
    return %arg0, %c0_i32 : i32, i32
  }
  func.func @transform_2(%arg0: i32) -> (i32, i32, i32) {
    %c0_i32 = arith.constant 0 : i32
    %c0_i32_0 = arith.constant 0 : i32
    %c0_i32_1 = arith.constant 0 : i32
    %c0_i32_2 = arith.constant 0 : i32
    return %c0_i32, %c0_i32_0, %c0_i32_1 : i32, i32, i32
  }
  func.func @transform_3(%arg0: i32) -> (i32, i32, i32) {
    %c0_i32 = arith.constant 0 : i32
    %c0_i32_0 = arith.constant 0 : i32
    %c0_i32_1 = arith.constant 0 : i32
    %c0_i32_2 = arith.constant 0 : i32
    return %c0_i32, %c0_i32_0, %c0_i32_1 : i32, i32, i32
  }
  func.func @transform_4(%arg0: i32) -> (i32, i32, i32) {
    %c0_i32 = arith.constant 0 : i32
    %c0_i32_0 = arith.constant 0 : i32
    %c0_i32_1 = arith.constant 0 : i32
    %c0_i32_2 = arith.constant 0 : i32
    return %c0_i32, %c0_i32_0, %c0_i32_1 : i32, i32, i32
  }
  func.func @transform_5(%arg0: i32) -> (i32, i32, i32) {
    %c0_i32 = arith.constant 0 : i32
    %c0_i32_0 = arith.constant 0 : i32
    %c0_i32_1 = arith.constant 0 : i32
    %c0_i32_2 = arith.constant 0 : i32
    return %c0_i32, %c0_i32_0, %c0_i32_1 : i32, i32, i32
  }
  func.func @transform_6(%arg0: i32) -> (i32, i32, i32) {
    %c0_i32 = arith.constant 0 : i32
    %c0_i32_0 = arith.constant 0 : i32
    %c0_i32_1 = arith.constant 0 : i32
    %c0_i32_2 = arith.constant 0 : i32
    return %c0_i32, %c0_i32_0, %c0_i32_1 : i32, i32, i32
  }
  func.func @transform_7(%arg0: i32) -> (i32, i32, i32) {
    %c0_i32 = arith.constant 0 : i32
    %c0_i32_0 = arith.constant 0 : i32
    %c0_i32_1 = arith.constant 0 : i32
    %c0_i32_2 = arith.constant 0 : i32
    return %c0_i32, %c0_i32_0, %c0_i32_1 : i32, i32, i32
  }
  func.func @transform_8(%arg0: i32) -> (i32, i32, i32) {
    %c0_i32 = arith.constant 0 : i32
    %c0_i32_0 = arith.constant 0 : i32
    %c0_i32_1 = arith.constant 0 : i32
    %c0_i32_2 = arith.constant 0 : i32
    return %c0_i32, %c0_i32_0, %c0_i32_1 : i32, i32, i32
  }
  func.func @transform_9(%arg0: i32) -> (i32, i32, i32) {
    %c0_i32 = arith.constant 0 : i32
    %c0_i32_0 = arith.constant 0 : i32
    %c0_i32_1 = arith.constant 0 : i32
    %c0_i32_2 = arith.constant 0 : i32
    return %c0_i32, %c0_i32_0, %c0_i32_1 : i32, i32, i32
  }
  func.func @transform_10(%arg0: i32) -> (i32, i32) {
    %c0_i32 = arith.constant 0 : i32
    %c0_i32_0 = arith.constant 0 : i32
    return %arg0, %c0_i32 : i32, i32
  }
  func.func @transform_11(%arg0: i32) -> (i32, i32) {
    %c0_i32 = arith.constant 0 : i32
    %c0_i32_0 = arith.constant 0 : i32
    return %arg0, %c0_i32 : i32, i32
  }
  func.func @transform_12(%arg0: i32) -> (i32, i32) {
    %c0_i32 = arith.constant 0 : i32
    %c0_i32_0 = arith.constant 0 : i32
    return %arg0, %c0_i32 : i32, i32
  }
}

</mosaic_0001>

<llo_original>
// kernel: dssm_forward.1
$region0: #{dssm_forward.1}
  #allocation0 [shape = 'u32[]', space=smem, size = 0x4, offset = 0x4, fixed_abs, tag = 'smem constant byte address 0x4 - core index']
  #allocation1 [shape = 'u32[144,128]{1,0:T(1,128)}', space=vmem, size = 0x12000, scoped, tag = 'internal scratch']
  %s0 = inlined_call_operand.vmem [shape: f32[64,128], index: 0, kind: input, shape index: {}]
  %s1 = inlined_call_operand.vmem [shape: f32[64,128], index: 1, kind: input, shape index: {}]
  %s2 = inlined_call_operand.vmem [shape: f32[2,128,256], index: 2, kind: input, shape index: {}]
  %s3 = inlined_call_operand.vmem [shape: f32[2,1,256], index: 3, kind: input, shape index: {}]
  %s4 = inlined_call_operand.vmem [shape: f32[2,256,128], index: 4, kind: input, shape index: {}]
  %s5 = inlined_call_operand.vmem [shape: f32[2,1,128], index: 5, kind: input, shape index: {}]
  %s6 = inlined_call_operand.vmem [shape: f32[2,128,256], index: 6, kind: input, shape index: {}]
  %s7 = inlined_call_operand.vmem [shape: f32[2,1,256], index: 7, kind: input, shape index: {}]
  %s8 = inlined_call_operand.vmem [shape: f32[2,256,128], index: 8, kind: input, shape index: {}]
  %s9 = inlined_call_operand.vmem [shape: f32[2,1,128], index: 9, kind: input, shape index: {}]
  %s10 = inlined_call_operand.vmem [shape: f32[64,2], index: 10, kind: output, shape index: {0}]
  %s11 = inlined_call_operand.vmem [shape: bf16[64,256], index: 11, kind: output, shape index: {1}]
  %s12 = inlined_call_operand.vmem [shape: bf16[64,256], index: 12, kind: output, shape index: {2}]
  %13 = xla_tuple %s10, %s11, %s12
  %s14 = sld [smem:[#allocation0]]
  $region89: #{dssm_forward.1} parent=0
    _
  %s16 = ssub.s32 1, %s14
  %s17 = scalar_select 0, %s16, %s14
  loop: start=0, step=1, limit=4
  $region2: #{dssm_forward.1} parent=0 // loop_pre_header
    _
  $region3: #{dssm_forward.1} parent=0 // loop_header
    %s19 = sphi 0, %s23
    %p20 = scmp.ge.s32.totalorder %s19, 4
    %s29 = sphi 0, %s31
    %s32 = sphi 0, %s29
    %s33 = sphi 0, %s32
    %s49 = sphi 0, %s33
    %s55 = sphi 0, %s57
    %s58 = sphi 0, %s55
    %s59 = sphi 0, %s58
    %s75 = sphi 0, %s59
    %s79 = sphi 0, %s79
    %s81 = sphi 0, %s79
    %s82 = sphi 0, %s81
    %s96 = sphi 0, %s82
    %s100 = sphi 0, %s100
    %s102 = sphi 0, %s100
    %s103 = sphi 0, %s102
    %s117 = sphi 0, %s103
    %s121 = sphi 0, %s121
    %s123 = sphi 0, %s121
    %s124 = sphi 0, %s123
    %s138 = sphi 0, %s124
    %s142 = sphi 0, %s142
    %s144 = sphi 0, %s142
    %s145 = sphi 0, %s144
    %s159 = sphi 0, %s145
    %s163 = sphi 0, %s163
    %s165 = sphi 0, %s163
    %s166 = sphi 0, %s165
    %s180 = sphi 0, %s166
    %s184 = sphi 0, %s184
    %s186 = sphi 0, %s184
    %s187 = sphi 0, %s186
    %s201 = sphi 0, %s187
    %s205 = sphi 0, %s205
    %s207 = sphi 0, %s205
    %s208 = sphi 0, %s207
    %s222 = sphi 0, %s208
    %s226 = sphi 0, %s226
    %s228 = sphi 0, %s226
    %s229 = sphi 0, %s228
    %s243 = sphi 0, %s229
    %s249 = sphi 0, %s251
    %s252 = sphi 0, %s249
    %s253 = sphi 0, %s252
    %s269 = sphi 0, %s253
    %s275 = sphi 0, %s277
    %s278 = sphi 0, %s275
    %s279 = sphi 0, %s278
    %s295 = sphi 0, %s279
    %s301 = sphi 0, %s303
    %s304 = sphi 0, %s301
    %s305 = sphi 0, %s304
    %s321 = sphi 0, %s305
  $region4: #{dssm_forward.1} parent=0 // loop_header_branch
    %22 = sbr.rel (%p20) target = $region8
  $region5: #{dssm_forward.1} parent=0 // loop_body
    %s24 = ssub.s32 %s19, 1
    %s25 = ssub.s32 %s19, 2
    %s26 = sadd.s32 %s19, 1
    %s27 = ssub.s32 %s19, %s26
    %p28 = scmp.eq.s32.totalorder %s27, 0
    %s30 = sadd.s32 %s29, 1
    %s31 = scalar_select %p28, %s29, %s30
    %p34 = pneg %p28
    %p35 = scmp.eq.s32.totalorder %s19, 1
    %p36 = por %p34, %p35
    %p37 = scmp.ne.s32.totalorder %s29, %s32
    %p38 = scmp.eq.s32.totalorder %s19, 0
    %p39 = por %p37, %p38
    %p40 = scmp.ne.s32.totalorder %s29, %s32
    %p41 = scmp.eq.s32.totalorder %s24, 1
    %p42 = por %p40, %p41
    %p43 = scmp.ne.s32.totalorder %s32, %s33
    %p44 = scmp.eq.s32.totalorder %s24, 0
    %p45 = por %p43, %p44
    %p46 = scmp.ne.s32.totalorder %s32, %s33
    %p47 = scmp.eq.s32.totalorder %s25, 1
    %p48 = por %p46, %p47
    %p50 = scmp.ne.s32.totalorder %s33, %s49
    %p51 = scmp.eq.s32.totalorder %s25, 0
    %p52 = por %p50, %p51
    %s53 = ssub.s32 %s19, %s26
    %p54 = scmp.eq.s32.totalorder %s53, 0
    %s56 = sadd.s32 %s55, 1
    %s57 = scalar_select %p54, %s55, %s56
    %p60 = pneg %p54
    %p61 = scmp.eq.s32.totalorder %s19, 1
    %p62 = por %p60, %p61
    %p63 = scmp.ne.s32.totalorder %s55, %s58
    %p64 = scmp.eq.s32.totalorder %s19, 0
    %p65 = por %p63, %p64
    %p66 = scmp.ne.s32.totalorder %s55, %s58
    %p67 = scmp.eq.s32.totalorder %s24, 1
    %p68 = por %p66, %p67
    %p69 = scmp.ne.s32.totalorder %s58, %s59
    %p70 = scmp.eq.s32.totalorder %s24, 0
    %p71 = por %p69, %p70
    %p72 = scmp.ne.s32.totalorder %s58, %s59
    %p73 = scmp.eq.s32.totalorder %s25, 1
    %p74 = por %p72, %p73
    %p76 = scmp.ne.s32.totalorder %s59, %s75
    %p77 = scmp.eq.s32.totalorder %s25, 0
    %p78 = por %p76, %p77
    %s80 = sadd.s32 %s79, 1
    %p83 = scmp.eq.s32.totalorder %s19, 1
    %p84 = scmp.ne.s32.totalorder %s79, %s81
    %p85 = scmp.eq.s32.totalorder %s19, 0
    %p86 = por %p84, %p85
    %p87 = scmp.ne.s32.totalorder %s79, %s81
    %p88 = scmp.eq.s32.totalorder %s24, 1
    %p89 = por %p87, %p88
    %p90 = scmp.ne.s32.totalorder %s81, %s82
    %p91 = scmp.eq.s32.totalorder %s24, 0
    %p92 = por %p90, %p91
    %p93 = scmp.ne.s32.totalorder %s81, %s82
    %p94 = scmp.eq.s32.totalorder %s25, 1
    %p95 = por %p93, %p94
    %p97 = scmp.ne.s32.totalorder %s82, %s96
    %p98 = scmp.eq.s32.totalorder %s25, 0
    %p99 = por %p97, %p98
    %s101 = sadd.s32 %s100, 1
    %p104 = scmp.eq.s32.totalorder %s19, 1
    %p105 = scmp.ne.s32.totalorder %s100, %s102
    %p106 = scmp.eq.s32.totalorder %s19, 0
    %p107 = por %p105, %p106
    %p108 = scmp.ne.s32.totalorder %s100, %s102
    %p109 = scmp.eq.s32.totalorder %s24, 1
    %p110 = por %p108, %p109
    %p111 = scmp.ne.s32.totalorder %s102, %s103
    %p112 = scmp.eq.s32.totalorder %s24, 0
    %p113 = por %p111, %p112
    %p114 = scmp.ne.s32.totalorder %s102, %s103
    %p115 = scmp.eq.s32.totalorder %s25, 1
    %p116 = por %p114, %p115
    %p118 = scmp.ne.s32.totalorder %s103, %s117
    %p119 = scmp.eq.s32.totalorder %s25, 0
    %p120 = por %p118, %p119
    %s122 = sadd.s32 %s121, 1
    %p125 = scmp.eq.s32.totalorder %s19, 1
    %p126 = scmp.ne.s32.totalorder %s121, %s123
    %p127 = scmp.eq.s32.totalorder %s19, 0
    %p128 = por %p126, %p127
    %p129 = scmp.ne.s32.totalorder %s121, %s123
    %p130 = scmp.eq.s32.totalorder %s24, 1
    %p131 = por %p129, %p130
    %p132 = scmp.ne.s32.totalorder %s123, %s124
    %p133 = scmp.eq.s32.totalorder %s24, 0
    %p134 = por %p132, %p133
    %p135 = scmp.ne.s32.totalorder %s123, %s124
    %p136 = scmp.eq.s32.totalorder %s25, 1
    %p137 = por %p135, %p136
    %p139 = scmp.ne.s32.totalorder %s124, %s138
    %p140 = scmp.eq.s32.totalorder %s25, 0
    %p141 = por %p139, %p140
    %s143 = sadd.s32 %s142, 1
    %p146 = scmp.eq.s32.totalorder %s19, 1
    %p147 = scmp.ne.s32.totalorder %s142, %s144
    %p148 = scmp.eq.s32.totalorder %s19, 0
    %p149 = por %p147, %p148
    %p150 = scmp.ne.s32.totalorder %s142, %s144
    %p151 = scmp.eq.s32.totalorder %s24, 1
    %p152 = por %p150, %p151
    %p153 = scmp.ne.s32.totalorder %s144, %s145
    %p154 = scmp.eq.s32.totalorder %s24, 0
    %p155 = por %p153, %p154
    %p156 = scmp.ne.s32.totalorder %s144, %s145
    %p157 = scmp.eq.s32.totalorder %s25, 1
    %p158 = por %p156, %p157
    %p160 = scmp.ne.s32.totalorder %s145, %s159
    %p161 = scmp.eq.s32.totalorder %s25, 0
    %p162 = por %p160, %p161
    %s164 = sadd.s32 %s163, 1
    %p167 = scmp.eq.s32.totalorder %s19, 1
    %p168 = scmp.ne.s32.totalorder %s163, %s165
    %p169 = scmp.eq.s32.totalorder %s19, 0
    %p170 = por %p168, %p169
    %p171 = scmp.ne.s32.totalorder %s163, %s165
    %p172 = scmp.eq.s32.totalorder %s24, 1
    %p173 = por %p171, %p172
    %p174 = scmp.ne.s32.totalorder %s165, %s166
    %p175 = scmp.eq.s32.totalorder %s24, 0
    %p176 = por %p174, %p175
    %p177 = scmp.ne.s32.totalorder %s165, %s166
    %p178 = scmp.eq.s32.totalorder %s25, 1
    %p179 = por %p177, %p178
    %p181 = scmp.ne.s32.totalorder %s166, %s180
    %p182 = scmp.eq.s32.totalorder %s25, 0
    %p183 = por %p181, %p182
    %s185 = sadd.s32 %s184, 1
    %p188 = scmp.eq.s32.totalorder %s19, 1
    %p189 = scmp.ne.s32.totalorder %s184, %s186
    %p190 = scmp.eq.s32.totalorder %s19, 0
    %p191 = por %p189, %p190
    %p192 = scmp.ne.s32.totalorder %s184, %s186
    %p193 = scmp.eq.s32.totalorder %s24, 1
    %p194 = por %p192, %p193
    %p195 = scmp.ne.s32.totalorder %s186, %s187
    %p196 = scmp.eq.s32.totalorder %s24, 0
    %p197 = por %p195, %p196
    %p198 = scmp.ne.s32.totalorder %s186, %s187
    %p199 = scmp.eq.s32.totalorder %s25, 1
    %p200 = por %p198, %p199
    %p202 = scmp.ne.s32.totalorder %s187, %s201
    %p203 = scmp.eq.s32.totalorder %s25, 0
    %p204 = por %p202, %p203
    %s206 = sadd.s32 %s205, 1
    %p209 = scmp.eq.s32.totalorder %s19, 1
    %p210 = scmp.ne.s32.totalorder %s205, %s207
    %p211 = scmp.eq.s32.totalorder %s19, 0
    %p212 = por %p210, %p211
    %p213 = scmp.ne.s32.totalorder %s205, %s207
    %p214 = scmp.eq.s32.totalorder %s24, 1
    %p215 = por %p213, %p214
    %p216 = scmp.ne.s32.totalorder %s207, %s208
    %p217 = scmp.eq.s32.totalorder %s24, 0
    %p218 = por %p216, %p217
    %p219 = scmp.ne.s32.totalorder %s207, %s208
    %p220 = scmp.eq.s32.totalorder %s25, 1
    %p221 = por %p219, %p220
    %p223 = scmp.ne.s32.totalorder %s208, %s222
    %p224 = scmp.eq.s32.totalorder %s25, 0
    %p225 = por %p223, %p224
    %s227 = sadd.s32 %s226, 1
    %p230 = scmp.eq.s32.totalorder %s19, 1
    %p231 = scmp.ne.s32.totalorder %s226, %s228
    %p232 = scmp.eq.s32.totalorder %s19, 0
    %p233 = por %p231, %p232
    %p234 = scmp.ne.s32.totalorder %s226, %s228
    %p235 = scmp.eq.s32.totalorder %s24, 1
    %p236 = por %p234, %p235
    %p237 = scmp.ne.s32.totalorder %s228, %s229
    %p238 = scmp.eq.s32.totalorder %s24, 0
    %p239 = por %p237, %p238
    %p240 = scmp.ne.s32.totalorder %s228, %s229
    %p241 = scmp.eq.s32.totalorder %s25, 1
    %p242 = por %p240, %p241
    %p244 = scmp.ne.s32.totalorder %s229, %s243
    %p245 = scmp.eq.s32.totalorder %s25, 0
    %p246 = por %p244, %p245
    %s247 = ssub.s32 %s19, %s26
    %p248 = scmp.eq.s32.totalorder %s247, 0
    %s250 = sadd.s32 %s249, 1
    %s251 = scalar_select %p248, %s249, %s250
    %p254 = pneg %p248
    %p255 = scmp.eq.s32.totalorder %s19, 1
    %p256 = por %p254, %p255
    %p257 = scmp.ne.s32.totalorder %s249, %s252
    %p258 = scmp.eq.s32.totalorder %s19, 0
    %p259 = por %p257, %p258
    %p260 = scmp.ne.s32.totalorder %s249, %s252
    %p261 = scmp.eq.s32.totalorder %s24, 1
    %p262 = por %p260, %p261
    %p263 = scmp.ne.s32.totalorder %s252, %s253
    %p264 = scmp.eq.s32.totalorder %s24, 0
    %p265 = por %p263, %p264
    %p266 = scmp.ne.s32.totalorder %s252, %s253
    %p267 = scmp.eq.s32.totalorder %s25, 1
    %p268 = por %p266, %p267
    %p270 = scmp.ne.s32.totalorder %s253, %s269
    %p271 = scmp.eq.s32.totalorder %s25, 0
    %p272 = por %p270, %p271
    %s273 = ssub.s32 %s19, %s26
    %p274 = scmp.eq.s32.totalorder %s273, 0
    %s276 = sadd.s32 %s275, 1
    %s277 = scalar_select %p274, %s275, %s276
    %p280 = pneg %p274
    %p281 = scmp.eq.s32.totalorder %s19, 1
    %p282 = por %p280, %p281
    %p283 = scmp.ne.s32.totalorder %s275, %s278
    %p284 = scmp.eq.s32.totalorder %s19, 0
    %p285 = por %p283, %p284
    %p286 = scmp.ne.s32.totalorder %s275, %s278
    %p287 = scmp.eq.s32.totalorder %s24, 1
    %p288 = por %p286, %p287
    %p289 = scmp.ne.s32.totalorder %s278, %s279
    %p290 = scmp.eq.s32.totalorder %s24, 0
    %p291 = por %p289, %p290
    %p292 = scmp.ne.s32.totalorder %s278, %s279
    %p293 = scmp.eq.s32.totalorder %s25, 1
    %p294 = por %p292, %p293
    %p296 = scmp.ne.s32.totalorder %s279, %s295
    %p297 = scmp.eq.s32.totalorder %s25, 0
    %p298 = por %p296, %p297
    %s299 = ssub.s32 %s19, %s26
    %p300 = scmp.eq.s32.totalorder %s299, 0
    %s302 = sadd.s32 %s301, 1
    %s303 = scalar_select %p300, %s301, %s302
    %p306 = pneg %p300
    %p307 = scmp.eq.s32.totalorder %s19, 1
    %p308 = por %p306, %p307
    %p309 = scmp.ne.s32.totalorder %s301, %s304
    %p310 = scmp.eq.s32.totalorder %s19, 0
    %p311 = por %p309, %p310
    %p312 = scmp.ne.s32.totalorder %s301, %s304
    %p313 = scmp.eq.s32.totalorder %s24, 1
    %p314 = por %p312, %p313
    %p315 = scmp.ne.s32.totalorder %s304, %s305
    %p316 = scmp.eq.s32.totalorder %s24, 0
    %p317 = por %p315, %p316
    %p318 = scmp.ne.s32.totalorder %s304, %s305
    %p319 = scmp.eq.s32.totalorder %s25, 1
    %p320 = por %p318, %p319
    %p322 = scmp.ne.s32.totalorder %s305, %s321
    %p323 = scmp.eq.s32.totalorder %s25, 0
    %p324 = por %p322, %p323
    %p325 = scmp.le.s32.totalorder 1, %s19
    %p326 = scmp.lt.s32.totalorder %s19, 3
    %p327 = pnand %p325, %p326
    %p328 = pneg %p327
    // Predicated region
    $region9: #{dssm_forward.1} parent=5 // pred_check
      _
    $region10: #{dssm_forward.1} parent=5 // pred_check_branch
      %330 = sbr.rel (%p327) target = $region12
    $region11: #{dssm_forward.1} parent=5 // pred_region
      %s331 = ssub.s32 %s19, 1
      // Predicated region
      $region13: #{dssm_forward.1} parent=11 // pred_check
        %p332 = pneg %p92
      $region14: #{dssm_forward.1} parent=11 // pred_check_branch
        %334 = sbr.rel (%p332) target = $region16
      $region15: #{dssm_forward.1} parent=11 // pred_region
        _
      $region16: #{dssm_forward.1} parent=11 // pred_fallthru
        _
      // Predicated region
      $region17: #{dssm_forward.1} parent=11 // pred_check
        %p335 = pneg %p113
      $region18: #{dssm_forward.1} parent=11 // pred_check_branch
        %337 = sbr.rel (%p335) target = $region20
      $region19: #{dssm_forward.1} parent=11 // pred_region
        _
      $region20: #{dssm_forward.1} parent=11 // pred_fallthru
        _
      // Predicated region
      $region21: #{dssm_forward.1} parent=11 // pred_check
        %p338 = pneg %p134
      $region22: #{dssm_forward.1} parent=11 // pred_check_branch
        %340 = sbr.rel (%p338) target = $region24
      $region23: #{dssm_forward.1} parent=11 // pred_region
        _
      $region24: #{dssm_forward.1} parent=11 // pred_fallthru
        _
      // Predicated region
      $region25: #{dssm_forward.1} parent=11 // pred_check
        %p341 = pneg %p155
      $region26: #{dssm_forward.1} parent=11 // pred_check_branch
        %343 = sbr.rel (%p341) target = $region28
      $region27: #{dssm_forward.1} parent=11 // pred_region
        _
      $region28: #{dssm_forward.1} parent=11 // pred_fallthru
        _
      // Predicated region
      $region29: #{dssm_forward.1} parent=11 // pred_check
        %p344 = pneg %p176
      $region30: #{dssm_forward.1} parent=11 // pred_check_branch
        %346 = sbr.rel (%p344) target = $region32
      $region31: #{dssm_forward.1} parent=11 // pred_region
        _
      $region32: #{dssm_forward.1} parent=11 // pred_fallthru
        _
      // Predicated region
      $region33: #{dssm_forward.1} parent=11 // pred_check
        %p347 = pneg %p197
      $region34: #{dssm_forward.1} parent=11 // pred_check_branch
        %349 = sbr.rel (%p347) target = $region36
      $region35: #{dssm_forward.1} parent=11 // pred_region
        _
      $region36: #{dssm_forward.1} parent=11 // pred_fallthru
        _
      // Predicated region
      $region37: #{dssm_forward.1} parent=11 // pred_check
        %p350 = pneg %p218
      $region38: #{dssm_forward.1} parent=11 // pred_check_branch
        %352 = sbr.rel (%p350) target = $region40
      $region39: #{dssm_forward.1} parent=11 // pred_region
        _
      $region40: #{dssm_forward.1} parent=11 // pred_fallthru
        _
      // Predicated region
      $region41: #{dssm_forward.1} parent=11 // pred_check
        %p353 = pneg %p239
      $region42: #{dssm_forward.1} parent=11 // pred_check_branch
        %355 = sbr.rel (%p353) target = $region44
      $region43: #{dssm_forward.1} parent=11 // pred_region
        _
      $region44: #{dssm_forward.1} parent=11 // pred_fallthru
        _
    $region12: #{dssm_forward.1} parent=5 // pred_fallthru
      _
    %p356 = scmp.lt.s32.totalorder %s19, 2
    // Predicated region
    $region45: #{dssm_forward.1} parent=5 // pred_check
      %p357 = pneg %p356
    $region46: #{dssm_forward.1} parent=5 // pred_check_branch
      %359 = sbr.rel (%p357) target = $region48
    $region47: #{dssm_forward.1} parent=5 // pred_region
      // Predicated region
      $region49: #{dssm_forward.1} parent=47 // pred_check
        %p360 = pneg %p39
      $region50: #{dssm_forward.1} parent=47 // pred_check_branch
        %362 = sbr.rel (%p360) target = $region52
      $region51: #{dssm_forward.1} parent=47 // pred_region
        %s363 = smul.u32 4, %s19
        %p364 = scmp.lt.s32.totalorder %s363, 7
        %s365 = scalar_select %p364, %s363, 7
        %s366 = smul.addr %s365, 8
        %s367 = scalar_lea.vmem %s0, %s366
        %s368 = smul.u32 4, %s19
      $region52: #{dssm_forward.1} parent=47 // pred_fallthru
        _
      // Predicated region
      $region53: #{dssm_forward.1} parent=47 // pred_check
        %p369 = pneg %p65
      $region54: #{dssm_forward.1} parent=47 // pred_check_branch
        %371 = sbr.rel (%p369) target = $region56
      $region55: #{dssm_forward.1} parent=47 // pred_region
        %s372 = smul.u32 4, %s19
        %p373 = scmp.lt.s32.totalorder %s372, 7
        %s374 = scalar_select %p373, %s372, 7
        %s375 = smul.addr %s374, 8
        %s376 = scalar_lea.vmem %s1, %s375
        %s377 = smul.u32 4, %s19
      $region56: #{dssm_forward.1} parent=47 // pred_fallthru
        _
    $region48: #{dssm_forward.1} parent=5 // pred_fallthru
      _
    %p378 = scmp.le.s32.totalorder 1, %s19
    %p379 = scmp.lt.s32.totalorder %s19, 3
    %p380 = pnand %p378, %p379
    %p381 = pneg %p380
    // Predicated region
    $region57: #{dssm_forward.1} parent=5 // pred_check
      _
    $region58: #{dssm_forward.1} parent=5 // pred_check_branch
      %383 = sbr.rel (%p380) target = $region60
    $region59: #{dssm_forward.1} parent=5 // pred_region
      %s384 = ssub.s32 %s19, 1
      %s385 = smul.u32 4, %s24
      %p386 = scmp.lt.s32.totalorder %s385, 7
      %s387 = scalar_select %p386, %s385, 7
      %s388 = smul.addr %s387, 8
      %s389 = scalar_lea.vmem %s0, %s388
      %p390 = pneg %p45
      %p391 = pneg %p42
      %s392 = smul.u32 4, %s24
      %p393 = scmp.lt.s32.totalorder %s392, 7
      %s394 = scalar_select %p393, %s392, 7
      %s395 = smul.addr %s394, 8
      %s396 = scalar_lea.vmem %s1, %s395
      %p397 = pneg %p71
      %p398 = pneg %p68
      %p399 = pneg %p92
      %p400 = pneg %p89
      %p401 = pneg %p113
      %p402 = pneg %p110
      %p403 = pneg %p134
      %p404 = pneg %p131
      %p405 = pneg %p155
      %p406 = pneg %p152
      %p407 = pneg %p176
      %p408 = pneg %p173
      %p409 = pneg %p197
      %p410 = pneg %p194
      %p411 = pneg %p218
      %p412 = pneg %p215
      %p413 = pneg %p239
      %p414 = pneg %p236
      %p415 = pneg %p265
      %p416 = pneg %p262
      %s417 = smul.u32 4, %s24
      %p418 = scmp.lt.s32.totalorder %s417, 7
      %s419 = scalar_select %p418, %s417, 7
      %s420 = smul.addr %s419, 8
      %s421 = scalar_lea.vmem %s10, %s420
      %p422 = pneg %p291
      %p423 = pneg %p288
      %s424 = smul.u32 4, %s24
      %p425 = scmp.lt.s32.totalorder %s424, 7
      %s426 = scalar_select %p425, %s424, 7
      %s427 = smul.addr %s426, 2
      %s428 = smul.addr %s427, 4
      %s429 = scalar_lea.vmem %s11, %s428
      %p430 = pneg %p317
      %p431 = pneg %p314
      %s432 = smul.u32 4, %s24
      %p433 = scmp.lt.s32.totalorder %s432, 7
      %s434 = scalar_select %p433, %s432, 7
      %s435 = smul.addr %s434, 2
      %s436 = smul.addr %s435, 4
      %s437 = scalar_lea.vmem %s12, %s436
      %s438 = smul.u32 4, %s24
      %p439 = scmp.lt.s32.totalorder %s438, 7
      %s440 = scalar_select %p439, %s438, 7
      %s441 = smul.addr %s440, 8
      %s442 = scalar_lea.vmem %s0, %s441
      %s443 = smul.u32 4, %s24
      %s444 = smul.u32 4, %s24
      %p445 = scmp.lt.s32.totalorder %s444, 7
      %s446 = scalar_select %p445, %s444, 7
      %s447 = smul.addr %s446, 8
      %s448 = scalar_lea.vmem %s1, %s447
      %s449 = smul.u32 4, %s24
      %s450 = smul.u32 4, %s24
      %p451 = scmp.lt.s32.totalorder %s450, 7
      %s452 = scalar_select %p451, %s450, 7
      %s453 = smul.addr %s452, 8
      %s454 = scalar_lea.vmem %s10, %s453
      %s455 = smul.u32 4, %s24
      %s456 = smul.u32 4, %s24
      %p457 = scmp.lt.s32.totalorder %s456, 7
      %s458 = scalar_select %p457, %s456, 7
      %s459 = smul.addr %s458, 2
      %s460 = smul.addr %s459, 4
      %s461 = scalar_lea.vmem %s11, %s460
      %s462 = smul.u32 4, %s24
      %s463 = smul.u32 4, %s24
      %p464 = scmp.lt.s32.totalorder %s463, 7
      %s465 = scalar_select %p464, %s463, 7
      %s466 = smul.addr %s465, 2
      %s467 = smul.addr %s466, 4
      %s468 = scalar_lea.vmem %s12, %s467
      %s469 = smul.u32 4, %s24
      %v470 = vld [vmem:[%s442] sm:$0xff]
      %v471 = vld [vmem:[%s442 + $0x8] sm:$0xff]
      %v472 = vld [vmem:[%s442 + $0x10] sm:$0xff]
      %v473 = vld [vmem:[%s442 + $0x18] sm:$0xff]
      %v474 = vld [vmem:[%s448] sm:$0xff]
      %v475 = vld [vmem:[%s448 + $0x8] sm:$0xff]
      %v476 = vld [vmem:[%s448 + $0x10] sm:$0xff]
      %v477 = vld [vmem:[%s448 + $0x18] sm:$0xff]
      %v478 = vld [vmem:[%s2] sm:$0xff]
      %v479 = vld [vmem:[%s2 + $0x8] sm:$0xff]
      %v480 = vld [vmem:[%s2 + $0x10] sm:$0xff]
      %v481 = vld [vmem:[%s2 + $0x18] sm:$0xff]
      %v482 = vld [vmem:[%s2 + $0x20] sm:$0xff]
      %v483 = vld [vmem:[%s2 + $0x28] sm:$0xff]
      %v484 = vld [vmem:[%s2 + $0x30] sm:$0xff]
      %v485 = vld [vmem:[%s2 + $0x38] sm:$0xff]
      %v486 = vld [vmem:[%s2 + $0x40] sm:$0xff]
      %v487 = vld [vmem:[%s2 + $0x48] sm:$0xff]
      %v488 = vld [vmem:[%s2 + $0x50] sm:$0xff]
      %v489 = vld [vmem:[%s2 + $0x58] sm:$0xff]
      %v490 = vld [vmem:[%s2 + $0x60] sm:$0xff]
      %v491 = vld [vmem:[%s2 + $0x68] sm:$0xff]
      %v492 = vld [vmem:[%s2 + $0x70] sm:$0xff]
      %v493 = vld [vmem:[%s2 + $0x78] sm:$0xff]
      %v494 = vld [vmem:[%s2 + $0x80] sm:$0xff]
      %v495 = vld [vmem:[%s2 + $0x88] sm:$0xff]
      %v496 = vld [vmem:[%s2 + $0x90] sm:$0xff]
      %v497 = vld [vmem:[%s2 + $0x98] sm:$0xff]
      %v498 = vld [vmem:[%s2 + $0xa0] sm:$0xff]
      %v499 = vld [vmem:[%s2 + $0xa8] sm:$0xff]
      %v500 = vld [vmem:[%s2 + $0xb0] sm:$0xff]
      %v501 = vld [vmem:[%s2 + $0xb8] sm:$0xff]
      %v502 = vld [vmem:[%s2 + $0xc0] sm:$0xff]
      %v503 = vld [vmem:[%s2 + $0xc8] sm:$0xff]
      %v504 = vld [vmem:[%s2 + $0xd0] sm:$0xff]
      %v505 = vld [vmem:[%s2 + $0xd8] sm:$0xff]
      %v506 = vld [vmem:[%s2 + $0xe0] sm:$0xff]
      %v507 = vld [vmem:[%s2 + $0xe8] sm:$0xff]
      %v508 = vld [vmem:[%s2 + $0xf0] sm:$0xff]
      %v509 = vld [vmem:[%s2 + $0xf8] sm:$0xff]
      %v510 = vld [vmem:[%s3] sm:$0x3]
      %v512 = vlaneseq
      %v513 = vshrl.u32 %v512, 7
      %v514 = vsub.s32 0, %v513
      %v515 = vrot.slane %v510, %v514
      %v516 = vlaneseq
      %v517 = vshrl.u32 %v516, 7
      %v518 = vsub.s32 1, %v517
      %v519 = vrot.slane %v510, %v518
      %522 = vmatprep.subr.mxu0 %v479
      %523 = vmatpush1.msra.mxu0 %v478
      %524 = vmatprep.subr.mxu0 %v481
      %525 = vmatpush1.msra.mxu0 %v480
      %526 = vmatprep.subr.mxu0 %v483
      %527 = vmatpush1.msra.mxu0 %v482
      %528 = vmatprep.subr.mxu0 %v485
      %529 = vmatpush1.msra.mxu0 %v484
      %530 = vmatprep.subr.mxu0 %v487
      %531 = vmatpush1.msra.mxu0 %v486
      %532 = vmatprep.subr.mxu0 %v489
      %533 = vmatpush1.msra.mxu0 %v488
      %534 = vmatprep.subr.mxu0 %v491
      %535 = vmatpush1.msra.mxu0 %v490
      %536 = vmatprep.subr.mxu0 %v493
      %537 = vmatpush1.msra.mxu0 %v492
      %538 = vmatprep.subr.mxu0 %v495
      %539 = vmatpush1.msra.mxu0 %v494
      %540 = vmatprep.subr.mxu0 %v497
      %541 = vmatpush1.msra.mxu0 %v496
      %542 = vmatprep.subr.mxu0 %v499
      %543 = vmatpush1.msra.mxu0 %v498
      %544 = vmatprep.subr.mxu0 %v501
      %545 = vmatpush1.msra.mxu0 %v500
      %546 = vmatprep.subr.mxu0 %v503
      %547 = vmatpush1.msra.mxu0 %v502
      %548 = vmatprep.subr.mxu0 %v505
      %549 = vmatpush1.msra.mxu0 %v504
      %550 = vmatprep.subr.mxu0 %v507
      %551 = vmatpush1.msra.mxu0 %v506
      %552 = vmatprep.subr.mxu0 %v509
      %553 = vmatpush1.msra.mxu0 %v508
      %554 = vmatprep.subr.mxu0 0.0
      %555 = vmatpush1.msra.mxu0 0.0
      %556 = vmatprep.subr.mxu0 0.0
      %557 = vmatpush1.msra.mxu0 0.0
      %558 = vmatprep.subr.mxu0 0.0
      %559 = vmatpush1.msra.mxu0 0.0
      %560 = vmatprep.subr.mxu0 0.0
      %561 = vmatpush1.msra.mxu0 0.0
      %562 = vmatprep.subr.mxu0 0.0
      %563 = vmatpush1.msra.mxu0 0.0
      %564 = vmatprep.subr.mxu0 0.0
      %565 = vmatpush1.msra.mxu0 0.0
      %566 = vmatprep.subr.mxu0 0.0
      %567 = vmatpush1.msra.mxu0 0.0
      %568 = vmatprep.subr.mxu0 0.0
      %569 = vmatpush1.msra.mxu0 0.0
      %570 = vmatprep.subr.mxu0 0.0
      %571 = vmatpush1.msra.mxu0 0.0
      %572 = vmatprep.subr.mxu0 0.0
      %573 = vmatpush1.msra.mxu0 0.0
      %574 = vmatprep.subr.mxu0 0.0
      %575 = vmatpush1.msra.mxu0 0.0
      %576 = vmatprep.subr.mxu0 0.0
      %577 = vmatpush1.msra.mxu0 0.0
      %578 = vmatprep.subr.mxu0 0.0
      %579 = vmatpush1.msra.mxu0 0.0
      %580 = vmatprep.subr.mxu0 0.0
      %581 = vmatpush1.msra.mxu0 0.0
      %582 = vmatprep.subr.mxu0 0.0
      %583 = vmatpush1.msra.mxu0 0.0
      %584 = vmatprep.subr.mxu0 0.0
      %585 = vmatpush1.msra.mxu0 0.0
      %586 = vmatprep.mubr.f32.mxu0 0.0
      %587 = vmatmul.mubr.f32.gmra.mrb[0].mxu0 %v470
      %v588 = vpop.f32.mrb[0].mxu0
      %v589 = vadd.f32 %v515, %v588
      %v590 = vpop.f32.mrb[0].mxu0
      %v591 = vadd.f32 %v519, %v590
      %592 = vmatprep.mubr.f32.mxu0 0.0
      %593 = vmatmul.mubr.f32.gmra.mrb[0].mxu0 %v471
      %v594 = vpop.f32.mrb[0].mxu0
      %v595 = vadd.f32 %v515, %v594
      %v596 = vpop.f32.mrb[0].mxu0
      %v597 = vadd.f32 %v519, %v596
      %598 = vmatprep.mubr.f32.mxu0 0.0
      %599 = vmatmul.mubr.f32.gmra.mrb[0].mxu0 %v472
      %v600 = vpop.f32.mrb[0].mxu0
      %v601 = vadd.f32 %v515, %v600
      %v602 = vpop.f32.mrb[0].mxu0
      %v603 = vadd.f32 %v519, %v602
      %604 = vmatprep.mubr.f32.mxu0 0.0
      %605 = vmatmul.mubr.f32.gmra.mrb[0].mxu0 %v473
      %v606 = vpop.f32.mrb[0].mxu0
      %v607 = vadd.f32 %v515, %v606
      %v608 = vpop.f32.mrb[0].mxu0
      %v609 = vadd.f32 %v519, %v608
      %610 = vdwg.mxu0
      %v611 = vmax.f32 %v589, 0.0
      %v612 = vmax.f32 %v591, 0.0
      %v613 = vmax.f32 %v595, 0.0
      %v614 = vmax.f32 %v597, 0.0
      %v615 = vmax.f32 %v601, 0.0
      %v616 = vmax.f32 %v603, 0.0
      %v617 = vmax.f32 %v607, 0.0
      %v618 = vmax.f32 %v609, 0.0
      %v619 = vld [vmem:[%s4] sm:$0xff]
      %v620 = vld [vmem:[%s4 + $0x8] sm:$0xff]
      %v621 = vld [vmem:[%s4 + $0x10] sm:$0xff]
      %v622 = vld [vmem:[%s4 + $0x18] sm:$0xff]
      %v623 = vld [vmem:[%s4 + $0x20] sm:$0xff]
      %v624 = vld [vmem:[%s4 + $0x28] sm:$0xff]
      %v625 = vld [vmem:[%s4 + $0x30] sm:$0xff]
      %v626 = vld [vmem:[%s4 + $0x38] sm:$0xff]
      %v627 = vld [vmem:[%s4 + $0x40] sm:$0xff]
      %v628 = vld [vmem:[%s4 + $0x48] sm:$0xff]
      %v629 = vld [vmem:[%s4 + $0x50] sm:$0xff]
      %v630 = vld [vmem:[%s4 + $0x58] sm:$0xff]
      %v631 = vld [vmem:[%s4 + $0x60] sm:$0xff]
      %v632 = vld [vmem:[%s4 + $0x68] sm:$0xff]
      %v633 = vld [vmem:[%s4 + $0x70] sm:$0xff]
      %v634 = vld [vmem:[%s4 + $0x78] sm:$0xff]
      %v635 = vld [vmem:[%s4 + $0x80] sm:$0xff]
      %v636 = vld [vmem:[%s4 + $0x88] sm:$0xff]
      %v637 = vld [vmem:[%s4 + $0x90] sm:$0xff]
      %v638 = vld [vmem:[%s4 + $0x98] sm:$0xff]
      %v639 = vld [vmem:[%s4 + $0xa0] sm:$0xff]
      %v640 = vld [vmem:[%s4 + $0xa8] sm:$0xff]
      %v641 = vld [vmem:[%s4 + $0xb0] sm:$0xff]
      %v642 = vld [vmem:[%s4 + $0xb8] sm:$0xff]
      %v643 = vld [vmem:[%s4 + $0xc0] sm:$0xff]
      %v644 = vld [vmem:[%s4 + $0xc8] sm:$0xff]
      %v645 = vld [vmem:[%s4 + $0xd0] sm:$0xff]
      %v646 = vld [vmem:[%s4 + $0xd8] sm:$0xff]
      %v647 = vld [vmem:[%s4 + $0xe0] sm:$0xff]
      %v648 = vld [vmem:[%s4 + $0xe8] sm:$0xff]
      %v649 = vld [vmem:[%s4 + $0xf0] sm:$0xff]
      %v650 = vld [vmem:[%s4 + $0xf8] sm:$0xff]
      %v651 = vld [vmem:[%s5] sm:$0x1]
      %v653 = vlaneseq
      %v654 = vshrl.u32 %v653, 7
      %v655 = vsub.s32 0, %v654
      %v656 = vrot.slane %v651, %v655
      %658 = vmatprep.subr.mxu0 0.0
      %659 = vmatpush1.msra.mxu0 %v619
      %660 = vmatprep.subr.mxu0 0.0
      %661 = vmatpush1.msra.mxu0 %v620
      %662 = vmatprep.subr.mxu0 0.0
      %663 = vmatpush1.msra.mxu0 %v621
      %664 = vmatprep.subr.mxu0 0.0
      %665 = vmatpush1.msra.mxu0 %v622
      %666 = vmatprep.subr.mxu0 0.0
      %667 = vmatpush1.msra.mxu0 %v623
      %668 = vmatprep.subr.mxu0 0.0
      %669 = vmatpush1.msra.mxu0 %v624
      %670 = vmatprep.subr.mxu0 0.0
      %671 = vmatpush1.msra.mxu0 %v625
      %672 = vmatprep.subr.mxu0 0.0
      %673 = vmatpush1.msra.mxu0 %v626
      %674 = vmatprep.subr.mxu0 0.0
      %675 = vmatpush1.msra.mxu0 %v627
      %676 = vmatprep.subr.mxu0 0.0
      %677 = vmatpush1.msra.mxu0 %v628
      %678 = vmatprep.subr.mxu0 0.0
      %679 = vmatpush1.msra.mxu0 %v629
      %680 = vmatprep.subr.mxu0 0.0
      %681 = vmatpush1.msra.mxu0 %v630
      %682 = vmatprep.subr.mxu0 0.0
      %683 = vmatpush1.msra.mxu0 %v631
      %684 = vmatprep.subr.mxu0 0.0
      %685 = vmatpush1.msra.mxu0 %v632
      %686 = vmatprep.subr.mxu0 0.0
      %687 = vmatpush1.msra.mxu0 %v633
      %688 = vmatprep.subr.mxu0 0.0
      %689 = vmatpush1.msra.mxu0 %v634
      %690 = vmatprep.subr.mxu0 0.0
      %691 = vmatpush1.msra.mxu0 %v635
      %692 = vmatprep.subr.mxu0 0.0
      %693 = vmatpush1.msra.mxu0 %v636
      %694 = vmatprep.subr.mxu0 0.0
      %695 = vmatpush1.msra.mxu0 %v637
      %696 = vmatprep.subr.mxu0 0.0
      %697 = vmatpush1.msra.mxu0 %v638
      %698 = vmatprep.subr.mxu0 0.0
      %699 = vmatpush1.msra.mxu0 %v639
      %700 = vmatprep.subr.mxu0 0.0
      %701 = vmatpush1.msra.mxu0 %v640
      %702 = vmatprep.subr.mxu0 0.0
      %703 = vmatpush1.msra.mxu0 %v641
      %704 = vmatprep.subr.mxu0 0.0
      %705 = vmatpush1.msra.mxu0 %v642
      %706 = vmatprep.subr.mxu0 0.0
      %707 = vmatpush1.msra.mxu0 %v643
      %708 = vmatprep.subr.mxu0 0.0
      %709 = vmatpush1.msra.mxu0 %v644
      %710 = vmatprep.subr.mxu0 0.0
      %711 = vmatpush1.msra.mxu0 %v645
      %712 = vmatprep.subr.mxu0 0.0
      %713 = vmatpush1.msra.mxu0 %v646
      %714 = vmatprep.subr.mxu0 0.0
      %715 = vmatpush1.msra.mxu0 %v647
      %716 = vmatprep.subr.mxu0 0.0
      %717 = vmatpush1.msra.mxu0 %v648
      %718 = vmatprep.subr.mxu0 0.0
      %719 = vmatpush1.msra.mxu0 %v649
      %720 = vmatprep.subr.mxu0 0.0
      %721 = vmatpush1.msra.mxu0 %v650
      %722 = vmatprep.mubr.f32.mxu0 %v612
      %723 = vmatmul.mubr.f32.gmra.mrb[0].mxu0 %v611
      %v724 = vpop.f32.mrb[0].mxu0
      %v725 = vadd.f32 %v656, %v724
      %v726 = vpop.f32.mrb[0].mxu0
      %727 = vmatprep.mubr.f32.mxu0 %v614
      %728 = vmatmul.mubr.f32.gmra.mrb[0].mxu0 %v613
      %v729 = vpop.f32.mrb[0].mxu0
      %v730 = vadd.f32 %v656, %v729
      %v731 = vpop.f32.mrb[0].mxu0
      %732 = vmatprep.mubr.f32.mxu0 %v616
      %733 = vmatmul.mubr.f32.gmra.mrb[0].mxu0 %v615
      %v734 = vpop.f32.mrb[0].mxu0
      %v735 = vadd.f32 %v656, %v734
      %v736 = vpop.f32.mrb[0].mxu0
      %737 = vmatprep.mubr.f32.mxu0 %v618
      %738 = vmatmul.mubr.f32.gmra.mrb[0].mxu0 %v617
      %v739 = vpop.f32.mrb[0].mxu0
      %v740 = vadd.f32 %v656, %v739
      %v741 = vpop.f32.mrb[0].mxu0
      %742 = vdwg.mxu0
      %v743 = vmax.f32 %v725, 0.0
      %v744 = vmax.f32 %v730, 0.0
      %v745 = vmax.f32 %v735, 0.0
      %v746 = vmax.f32 %v740, 0.0
      %v747 = vld [vmem:[%s6] sm:$0xff]
      %v748 = vld [vmem:[%s6 + $0x8] sm:$0xff]
      %v749 = vld [vmem:[%s6 + $0x10] sm:$0xff]
      %v750 = vld [vmem:[%s6 + $0x18] sm:$0xff]
      %v751 = vld [vmem:[%s6 + $0x20] sm:$0xff]
      %v752 = vld [vmem:[%s6 + $0x28] sm:$0xff]
      %v753 = vld [vmem:[%s6 + $0x30] sm:$0xff]
      %v754 = vld [vmem:[%s6 + $0x38] sm:$0xff]
      %v755 = vld [vmem:[%s6 + $0x40] sm:$0xff]
      %v756 = vld [vmem:[%s6 + $0x48] sm:$0xff]
      %v757 = vld [vmem:[%s6 + $0x50] sm:$0xff]
      %v758 = vld [vmem:[%s6 + $0x58] sm:$0xff]
      %v759 = vld [vmem:[%s6 + $0x60] sm:$0xff]
      %v760 = vld [vmem:[%s6 + $0x68] sm:$0xff]
      %v761 = vld [vmem:[%s6 + $0x70] sm:$0xff]
      %v762 = vld [vmem:[%s6 + $0x78] sm:$0xff]
      %v763 = vld [vmem:[%s6 + $0x80] sm:$0xff]
      %v764 = vld [vmem:[%s6 + $0x88] sm:$0xff]
      %v765 = vld [vmem:[%s6 + $0x90] sm:$0xff]
      %v766 = vld [vmem:[%s6 + $0x98] sm:$0xff]
      %v767 = vld [vmem:[%s6 + $0xa0] sm:$0xff]
      %v768 = vld [vmem:[%s6 + $0xa8] sm:$0xff]
      %v769 = vld [vmem:[%s6 + $0xb0] sm:$0xff]
      %v770 = vld [vmem:[%s6 + $0xb8] sm:$0xff]
      %v771 = vld [vmem:[%s6 + $0xc0] sm:$0xff]
      %v772 = vld [vmem:[%s6 + $0xc8] sm:$0xff]
      %v773 = vld [vmem:[%s6 + $0xd0] sm:$0xff]
      %v774 = vld [vmem:[%s6 + $0xd8] sm:$0xff]
      %v775 = vld [vmem:[%s6 + $0xe0] sm:$0xff]
      %v776 = vld [vmem:[%s6 + $0xe8] sm:$0xff]
      %v777 = vld [vmem:[%s6 + $0xf0] sm:$0xff]
      %v778 = vld [vmem:[%s6 + $0xf8] sm:$0xff]
      %v779 = vld [vmem:[%s7] sm:$0x3]
      %v781 = vlaneseq
      %v782 = vshrl.u32 %v781, 7
      %v783 = vsub.s32 0, %v782
      %v784 = vrot.slane %v779, %v783
      %v785 = vlaneseq
      %v786 = vshrl.u32 %v785, 7
      %v787 = vsub.s32 1, %v786
      %v788 = vrot.slane %v779, %v787
      %791 = vmatprep.subr.mxu0 %v748
      %792 = vmatpush1.msra.mxu0 %v747
      %793 = vmatprep.subr.mxu0 %v750
      %794 = vmatpush1.msra.mxu0 %v749
      %795 = vmatprep.subr.mxu0 %v752
      %796 = vmatpush1.msra.mxu0 %v751
      %797 = vmatprep.subr.mxu0 %v754
      %798 = vmatpush1.msra.mxu0 %v753
      %799 = vmatprep.subr.mxu0 %v756
      %800 = vmatpush1.msra.mxu0 %v755
      %801 = vmatprep.subr.mxu0 %v758
      %802 = vmatpush1.msra.mxu0 %v757
      %803 = vmatprep.subr.mxu0 %v760
      %804 = vmatpush1.msra.mxu0 %v759
      %805 = vmatprep.subr.mxu0 %v762
      %806 = vmatpush1.msra.mxu0 %v761
      %807 = vmatprep.subr.mxu0 %v764
      %808 = vmatpush1.msra.mxu0 %v763
      %809 = vmatprep.subr.mxu0 %v766
      %810 = vmatpush1.msra.mxu0 %v765
      %811 = vmatprep.subr.mxu0 %v768
      %812 = vmatpush1.msra.mxu0 %v767
      %813 = vmatprep.subr.mxu0 %v770
      %814 = vmatpush1.msra.mxu0 %v769
      %815 = vmatprep.subr.mxu0 %v772
      %816 = vmatpush1.msra.mxu0 %v771
      %817 = vmatprep.subr.mxu0 %v774
      %818 = vmatpush1.msra.mxu0 %v773
      %819 = vmatprep.subr.mxu0 %v776
      %820 = vmatpush1.msra.mxu0 %v775
      %821 = vmatprep.subr.mxu0 %v778
      %822 = vmatpush1.msra.mxu0 %v777
      %823 = vmatprep.subr.mxu0 0.0
      %824 = vmatpush1.msra.mxu0 0.0
      %825 = vmatprep.subr.mxu0 0.0
      %826 = vmatpush1.msra.mxu0 0.0
      %827 = vmatprep.subr.mxu0 0.0
      %828 = vmatpush1.msra.mxu0 0.0
      %829 = vmatprep.subr.mxu0 0.0
      %830 = vmatpush1.msra.mxu0 0.0
      %831 = vmatprep.subr.mxu0 0.0
      %832 = vmatpush1.msra.mxu0 0.0
      %833 = vmatprep.subr.mxu0 0.0
      %834 = vmatpush1.msra.mxu0 0.0
      %835 = vmatprep.subr.mxu0 0.0
      %836 = vmatpush1.msra.mxu0 0.0
      %837 = vmatprep.subr.mxu0 0.0
      %838 = vmatpush1.msra.mxu0 0.0
      %839 = vmatprep.subr.mxu0 0.0
      %840 = vmatpush1.msra.mxu0 0.0
      %841 = vmatprep.subr.mxu0 0.0
      %842 = vmatpush1.msra.mxu0 0.0
      %843 = vmatprep.subr.mxu0 0.0
      %844 = vmatpush1.msra.mxu0 0.0
      %845 = vmatprep.subr.mxu0 0.0
      %846 = vmatpush1.msra.mxu0 0.0
      %847 = vmatprep.subr.mxu0 0.0
      %848 = vmatpush1.msra.mxu0 0.0
      %849 = vmatprep.subr.mxu0 0.0
      %850 = vmatpush1.msra.mxu0 0.0
      %851 = vmatprep.subr.mxu0 0.0
      %852 = vmatpush1.msra.mxu0 0.0
      %853 = vmatprep.subr.mxu0 0.0
      %854 = vmatpush1.msra.mxu0 0.0
      %855 = vmatprep.mubr.f32.mxu0 0.0
      %856 = vmatmul.mubr.f32.gmra.mrb[0].mxu0 %v474
      %v857 = vpop.f32.mrb[0].mxu0
      %v858 = vadd.f32 %v784, %v857
      %v859 = vpop.f32.mrb[0].mxu0
      %v860 = vadd.f32 %v788, %v859
      %861 = vmatprep.mubr.f32.mxu0 0.0
      %862 = vmatmul.mubr.f32.gmra.mrb[0].mxu0 %v475
      %v863 = vpop.f32.mrb[0].mxu0
      %v864 = vadd.f32 %v784, %v863
      %v865 = vpop.f32.mrb[0].mxu0
      %v866 = vadd.f32 %v788, %v865
      %867 = vmatprep.mubr.f32.mxu0 0.0
      %868 = vmatmul.mubr.f32.gmra.mrb[0].mxu0 %v476
      %v869 = vpop.f32.mrb[0].mxu0
      %v870 = vadd.f32 %v784, %v869
      %v871 = vpop.f32.mrb[0].mxu0
      %v872 = vadd.f32 %v788, %v871
      %873 = vmatprep.mubr.f32.mxu0 0.0
      %874 = vmatmul.mubr.f32.gmra.mrb[0].mxu0 %v477
      %v875 = vpop.f32.mrb[0].mxu0
      %v876 = vadd.f32 %v784, %v875
      %v877 = vpop.f32.mrb[0].mxu0
      %v878 = vadd.f32 %v788, %v877
      %879 = vdwg.mxu0
      %v880 = vmax.f32 %v858, 0.0
      %v881 = vmax.f32 %v860, 0.0
      %v882 = vmax.f32 %v864, 0.0
      %v883 = vmax.f32 %v866, 0.0
      %v884 = vmax.f32 %v870, 0.0
      %v885 = vmax.f32 %v872, 0.0
      %v886 = vmax.f32 %v876, 0.0
      %v887 = vmax.f32 %v878, 0.0
      %v888 = vld [vmem:[%s8] sm:$0xff]
      %v889 = vld [vmem:[%s8 + $0x8] sm:$0xff]
      %v890 = vld [vmem:[%s8 + $0x10] sm:$0xff]
      %v891 = vld [vmem:[%s8 + $0x18] sm:$0xff]
      %v892 = vld [vmem:[%s8 + $0x20] sm:$0xff]
      %v893 = vld [vmem:[%s8 + $0x28] sm:$0xff]
      %v894 = vld [vmem:[%s8 + $0x30] sm:$0xff]
      %v895 = vld [vmem:[%s8 + $0x38] sm:$0xff]
      %v896 = vld [vmem:[%s8 + $0x40] sm:$0xff]
      %v897 = vld [vmem:[%s8 + $0x48] sm:$0xff]
      %v898 = vld [vmem:[%s8 + $0x50] sm:$0xff]
      %v899 = vld [vmem:[%s8 + $0x58] sm:$0xff]
      %v900 = vld [vmem:[%s8 + $0x60] sm:$0xff]
      %v901 = vld [vmem:[%s8 + $0x68] sm:$0xff]
      %v902 = vld [vmem:[%s8 + $0x70] sm:$0xff]
      %v903 = vld [vmem:[%s8 + $0x78] sm:$0xff]
      %v904 = vld [vmem:[%s8 + $0x80] sm:$0xff]
      %v905 = vld [vmem:[%s8 + $0x88] sm:$0xff]
      %v906 = vld [vmem:[%s8 + $0x90] sm:$0xff]
      %v907 = vld [vmem:[%s8 + $0x98] sm:$0xff]
      %v908 = vld [vmem:[%s8 + $0xa0] sm:$0xff]
      %v909 = vld [vmem:[%s8 + $0xa8] sm:$0xff]
      %v910 = vld [vmem:[%s8 + $0xb0] sm:$0xff]
      %v911 = vld [vmem:[%s8 + $0xb8] sm:$0xff]
      %v912 = vld [vmem:[%s8 + $0xc0] sm:$0xff]
      %v913 = vld [vmem:[%s8 + $0xc8] sm:$0xff]
      %v914 = vld [vmem:[%s8 + $0xd0] sm:$0xff]
      %v915 = vld [vmem:[%s8 + $0xd8] sm:$0xff]
      %v916 = vld [vmem:[%s8 + $0xe0] sm:$0xff]
      %v917 = vld [vmem:[%s8 + $0xe8] sm:$0xff]
      %v918 = vld [vmem:[%s8 + $0xf0] sm:$0xff]
      %v919 = vld [vmem:[%s8 + $0xf8] sm:$0xff]
      %v920 = vld [vmem:[%s9] sm:$0x1]
      %v922 = vlaneseq
      %v923 = vshrl.u32 %v922, 7
      %v924 = vsub.s32 0, %v923
      %v925 = vrot.slane %v920, %v924
      %927 = vmatprep.subr.mxu0 0.0
      %928 = vmatpush1.msra.mxu0 %v888
      %929 = vmatprep.subr.mxu0 0.0
      %930 = vmatpush1.msra.mxu0 %v889
      %931 = vmatprep.subr.mxu0 0.0
      %932 = vmatpush1.msra.mxu0 %v890
      %933 = vmatprep.subr.mxu0 0.0
      %934 = vmatpush1.msra.mxu0 %v891
      %935 = vmatprep.subr.mxu0 0.0
      %936 = vmatpush1.msra.mxu0 %v892
      %937 = vmatprep.subr.mxu0 0.0
      %938 = vmatpush1.msra.mxu0 %v893
      %939 = vmatprep.subr.mxu0 0.0
      %940 = vmatpush1.msra.mxu0 %v894
      %941 = vmatprep.subr.mxu0 0.0
      %942 = vmatpush1.msra.mxu0 %v895
      %943 = vmatprep.subr.mxu0 0.0
      %944 = vmatpush1.msra.mxu0 %v896
      %945 = vmatprep.subr.mxu0 0.0
      %946 = vmatpush1.msra.mxu0 %v897
      %947 = vmatprep.subr.mxu0 0.0
      %948 = vmatpush1.msra.mxu0 %v898
      %949 = vmatprep.subr.mxu0 0.0
      %950 = vmatpush1.msra.mxu0 %v899
      %951 = vmatprep.subr.mxu0 0.0
      %952 = vmatpush1.msra.mxu0 %v900
      %953 = vmatprep.subr.mxu0 0.0
      %954 = vmatpush1.msra.mxu0 %v901
      %955 = vmatprep.subr.mxu0 0.0
      %956 = vmatpush1.msra.mxu0 %v902
      %957 = vmatprep.subr.mxu0 0.0
      %958 = vmatpush1.msra.mxu0 %v903
      %959 = vmatprep.subr.mxu0 0.0
      %960 = vmatpush1.msra.mxu0 %v904
      %961 = vmatprep.subr.mxu0 0.0
      %962 = vmatpush1.msra.mxu0 %v905
      %963 = vmatprep.subr.mxu0 0.0
      %964 = vmatpush1.msra.mxu0 %v906
      %965 = vmatprep.subr.mxu0 0.0
      %966 = vmatpush1.msra.mxu0 %v907
      %967 = vmatprep.subr.mxu0 0.0
      %968 = vmatpush1.msra.mxu0 %v908
      %969 = vmatprep.subr.mxu0 0.0
      %970 = vmatpush1.msra.mxu0 %v909
      %971 = vmatprep.subr.mxu0 0.0
      %972 = vmatpush1.msra.mxu0 %v910
      %973 = vmatprep.subr.mxu0 0.0
      %974 = vmatpush1.msra.mxu0 %v911
      %975 = vmatprep.subr.mxu0 0.0
      %976 = vmatpush1.msra.mxu0 %v912
      %977 = vmatprep.subr.mxu0 0.0
      %978 = vmatpush1.msra.mxu0 %v913
      %979 = vmatprep.subr.mxu0 0.0
      %980 = vmatpush1.msra.mxu0 %v914
      %981 = vmatprep.subr.mxu0 0.0
      %982 = vmatpush1.msra.mxu0 %v915
      %983 = vmatprep.subr.mxu0 0.0
      %984 = vmatpush1.msra.mxu0 %v916
      %985 = vmatprep.subr.mxu0 0.0
      %986 = vmatpush1.msra.mxu0 %v917
      %987 = vmatprep.subr.mxu0 0.0
      %988 = vmatpush1.msra.mxu0 %v918
      %989 = vmatprep.subr.mxu0 0.0
      %990 = vmatpush1.msra.mxu0 %v919
      %991 = vmatprep.mubr.f32.mxu0 %v881
      %992 = vmatmul.mubr.f32.gmra.mrb[0].mxu0 %v880
      %v993 = vpop.f32.mrb[0].mxu0
      %v994 = vadd.f32 %v925, %v993
      %v995 = vpop.f32.mrb[0].mxu0
      %996 = vmatprep.mubr.f32.mxu0 %v883
      %997 = vmatmul.mubr.f32.gmra.mrb[0].mxu0 %v882
      %v998 = vpop.f32.mrb[0].mxu0
      %v999 = vadd.f32 %v925, %v998
      %v1000 = vpop.f32.mrb[0].mxu0
      %1001 = vmatprep.mubr.f32.mxu0 %v885
      %1002 = vmatmul.mubr.f32.gmra.mrb[0].mxu0 %v884
      %v1003 = vpop.f32.mrb[0].mxu0
      %v1004 = vadd.f32 %v925, %v1003
      %v1005 = vpop.f32.mrb[0].mxu0
      %1006 = vmatprep.mubr.f32.mxu0 %v887
      %1007 = vmatmul.mubr.f32.gmra.mrb[0].mxu0 %v886
      %v1008 = vpop.f32.mrb[0].mxu0
      %v1009 = vadd.f32 %v925, %v1008
      %v1010 = vpop.f32.mrb[0].mxu0
      %1011 = vdwg.mxu0
      %v1012 = vmax.f32 %v994, 0.0
      %v1013 = vmax.f32 %v999, 0.0
      %v1014 = vmax.f32 %v1004, 0.0
      %v1015 = vmax.f32 %v1009, 0.0
      %v1016 = vpack.c.bf16 %v744, %v743
      %v1017 = vpack.c.bf16 %v746, %v745
      %v1020 = vunpack.c.l.b16 %v1016
      %v1021 = vunpack.c.h.b16 %v1016
      %v1022 = vunpack.c.l.b16 %v1017
      %v1023 = vunpack.c.h.b16 %v1017
      %v1024 = vpack.c.b16 %v1020, %v1020
      %v1025 = vpack.c.b16 %v1021, %v1021
      %v1026 = vpack.c.b16 %v1022, %v1022
      %v1027 = vpack.c.b16 %v1023, %v1023
      %1032 = vst [vmem:[%s461] sm:$0xf] %v1024
      %1033 = vst [vmem:[%s461 + $0x8] sm:$0xf] %v1025
      %1034 = vst [vmem:[%s461 + $0x10] sm:$0xf] %v1026
      %1035 = vst [vmem:[%s461 + $0x18] sm:$0xf] %v1027
      %v1036 = vpack.c.bf16 %v1013, %v1012
      %v1037 = vpack.c.bf16 %v1015, %v1014
      %v1040 = vunpack.c.l.b16 %v1036
      %v1041 = vunpack.c.h.b16 %v1036
      %v1042 = vunpack.c.l.b16 %v1037
      %v1043 = vunpack.c.h.b16 %v1037
      %v1044 = vpack.c.b16 %v1040, %v1040
      %v1045 = vpack.c.b16 %v1041, %v1041
      %v1046 = vpack.c.b16 %v1042, %v1042
      %v1047 = vpack.c.b16 %v1043, %v1043
      %1052 = vst [vmem:[%s468] sm:$0xf] %v1044
      %1053 = vst [vmem:[%s468 + $0x8] sm:$0xf] %v1045
      %1054 = vst [vmem:[%s468 + $0x10] sm:$0xf] %v1046
      %1055 = vst [vmem:[%s468 + $0x18] sm:$0xf] %v1047
      %v1056 = vmul.f32 %v743, %v1012
      %v1057 = vmul.f32 %v744, %v1013
      %v1058 = vmul.f32 %v745, %v1014
      %v1059 = vmul.f32 %v746, %v1015
      %1060 = vadd.xlane.f32.xlu0 %v1056
      %v1061 = vpop.xlane.xlu0 %1060
      %1062 = vadd.xlane.f32.xlu0 %v1057
      %v1063 = vpop.xlane.xlu0 %1062
      %1064 = vadd.xlane.f32.xlu0 %v1058
      %v1065 = vpop.xlane.xlu0 %1064
      %1066 = vadd.xlane.f32.xlu0 %v1059
      %v1067 = vpop.xlane.xlu0 %1066
      %s1068 = scalar_lea.vmem %s2, 256
      %v1069 = vld [vmem:[%s1068] sm:$0xff]
      %v1070 = vld [vmem:[%s1068 + $0x8] sm:$0xff]
      %v1071 = vld [vmem:[%s1068 + $0x10] sm:$0xff]
      %v1072 = vld [vmem:[%s1068 + $0x18] sm:$0xff]
      %v1073 = vld [vmem:[%s1068 + $0x20] sm:$0xff]
      %v1074 = vld [vmem:[%s1068 + $0x28] sm:$0xff]
      %v1075 = vld [vmem:[%s1068 + $0x30] sm:$0xff]
      %v1076 = vld [vmem:[%s1068 + $0x38] sm:$0xff]
      %v1077 = vld [vmem:[%s1068 + $0x40] sm:$0xff]
      %v1078 = vld [vmem:[%s1068 + $0x48] sm:$0xff]
      %v1079 = vld [vmem:[%s1068 + $0x50] sm:$0xff]
      %v1080 = vld [vmem:[%s1068 + $0x58] sm:$0xff]
      %v1081 = vld [vmem:[%s1068 + $0x60] sm:$0xff]
      %v1082 = vld [vmem:[%s1068 + $0x68] sm:$0xff]
      %v1083 = vld [vmem:[%s1068 + $0x70] sm:$0xff]
      %v1084 = vld [vmem:[%s1068 + $0x78] sm:$0xff]
      %v1085 = vld [vmem:[%s1068 + $0x80] sm:$0xff]
      %v1086 = vld [vmem:[%s1068 + $0x88] sm:$0xff]
      %v1087 = vld [vmem:[%s1068 + $0x90] sm:$0xff]
      %v1088 = vld [vmem:[%s1068 + $0x98] sm:$0xff]
      %v1089 = vld [vmem:[%s1068 + $0xa0] sm:$0xff]
      %v1090 = vld [vmem:[%s1068 + $0xa8] sm:$0xff]
      %v1091 = vld [vmem:[%s1068 + $0xb0] sm:$0xff]
      %v1092 = vld [vmem:[%s1068 + $0xb8] sm:$0xff]
      %v1093 = vld [vmem:[%s1068 + $0xc0] sm:$0xff]
      %v1094 = vld [vmem:[%s1068 + $0xc8] sm:$0xff]
      %v1095 = vld [vmem:[%s1068 + $0xd0] sm:$0xff]
      %v1096 = vld [vmem:[%s1068 + $0xd8] sm:$0xff]
      %v1097 = vld [vmem:[%s1068 + $0xe0] sm:$0xff]
      %v1098 = vld [vmem:[%s1068 + $0xe8] sm:$0xff]
      %v1099 = vld [vmem:[%s1068 + $0xf0] sm:$0xff]
      %v1100 = vld [vmem:[%s1068 + $0xf8] sm:$0xff]
      %s1101 = scalar_lea.vmem %s3, 2
      %v1102 = vld [vmem:[%s1101] sm:$0x3]
      %v1104 = vlaneseq
      %v1105 = vshrl.u32 %v1104, 7
      %v1106 = vsub.s32 0, %v1105
      %v1107 = vrot.slane %v1102, %v1106
      %v1108 = vlaneseq
      %v1109 = vshrl.u32 %v1108, 7
      %v1110 = vsub.s32 1, %v1109
      %v1111 = vrot.slane %v1102, %v1110
      %1114 = vmatprep.subr.mxu0 %v1070
      %1115 = vmatpush1.msra.mxu0 %v1069
      %1116 = vmatprep.subr.mxu0 %v1072
      %1117 = vmatpush1.msra.mxu0 %v1071
      %1118 = vmatprep.subr.mxu0 %v1074
      %1119 = vmatpush1.msra.mxu0 %v1073
      %1120 = vmatprep.subr.mxu0 %v1076
      %1121 = vmatpush1.msra.mxu0 %v1075
      %1122 = vmatprep.subr.mxu0 %v1078
      %1123 = vmatpush1.msra.mxu0 %v1077
      %1124 = vmatprep.subr.mxu0 %v1080
      %1125 = vmatpush1.msra.mxu0 %v1079
      %1126 = vmatprep.subr.mxu0 %v1082
      %1127 = vmatpush1.msra.mxu0 %v1081
      %1128 = vmatprep.subr.mxu0 %v1084
      %1129 = vmatpush1.msra.mxu0 %v1083
      %1130 = vmatprep.subr.mxu0 %v1086
      %1131 = vmatpush1.msra.mxu0 %v1085
      %1132 = vmatprep.subr.mxu0 %v1088
      %1133 = vmatpush1.msra.mxu0 %v1087
      %1134 = vmatprep.subr.mxu0 %v1090
      %1135 = vmatpush1.msra.mxu0 %v1089
      %1136 = vmatprep.subr.mxu0 %v1092
      %1137 = vmatpush1.msra.mxu0 %v1091
      %1138 = vmatprep.subr.mxu0 %v1094
      %1139 = vmatpush1.msra.mxu0 %v1093
      %1140 = vmatprep.subr.mxu0 %v1096
      %1141 = vmatpush1.msra.mxu0 %v1095
      %1142 = vmatprep.subr.mxu0 %v1098
      %1143 = vmatpush1.msra.mxu0 %v1097
      %1144 = vmatprep.subr.mxu0 %v1100
      %1145 = vmatpush1.msra.mxu0 %v1099
      %1146 = vmatprep.subr.mxu0 0.0
      %1147 = vmatpush1.msra.mxu0 0.0
      %1148 = vmatprep.subr.mxu0 0.0
      %1149 = vmatpush1.msra.mxu0 0.0
      %1150 = vmatprep.subr.mxu0 0.0
      %1151 = vmatpush1.msra.mxu0 0.0
      %1152 = vmatprep.subr.mxu0 0.0
      %1153 = vmatpush1.msra.mxu0 0.0
      %1154 = vmatprep.subr.mxu0 0.0
      %1155 = vmatpush1.msra.mxu0 0.0
      %1156 = vmatprep.subr.mxu0 0.0
      %1157 = vmatpush1.msra.mxu0 0.0
      %1158 = vmatprep.subr.mxu0 0.0
      %1159 = vmatpush1.msra.mxu0 0.0
      %1160 = vmatprep.subr.mxu0 0.0
      %1161 = vmatpush1.msra.mxu0 0.0
      %1162 = vmatprep.subr.mxu0 0.0
      %1163 = vmatpush1.msra.mxu0 0.0
      %1164 = vmatprep.subr.mxu0 0.0
      %1165 = vmatpush1.msra.mxu0 0.0
      %1166 = vmatprep.subr.mxu0 0.0
      %1167 = vmatpush1.msra.mxu0 0.0
      %1168 = vmatprep.subr.mxu0 0.0
      %1169 = vmatpush1.msra.mxu0 0.0
      %1170 = vmatprep.subr.mxu0 0.0
      %1171 = vmatpush1.msra.mxu0 0.0
      %1172 = vmatprep.subr.mxu0 0.0
      %1173 = vmatpush1.msra.mxu0 0.0
      %1174 = vmatprep.subr.mxu0 0.0
      %1175 = vmatpush1.msra.mxu0 0.0
      %1176 = vmatprep.subr.mxu0 0.0
      %1177 = vmatpush1.msra.mxu0 0.0
      %1178 = vmatprep.mubr.f32.mxu0 0.0
      %1179 = vmatmul.mubr.f32.gmra.mrb[0].mxu0 %v470
      %v1180 = vpop.f32.mrb[0].mxu0
      %v1181 = vadd.f32 %v1107, %v1180
      %v1182 = vpop.f32.mrb[0].mxu0
      %v1183 = vadd.f32 %v1111, %v1182
      %1184 = vmatprep.mubr.f32.mxu0 0.0
      %1185 = vmatmul.mubr.f32.gmra.mrb[0].mxu0 %v471
      %v1186 = vpop.f32.mrb[0].mxu0
      %v1187 = vadd.f32 %v1107, %v1186
      %v1188 = vpop.f32.mrb[0].mxu0
      %v1189 = vadd.f32 %v1111, %v1188
      %1190 = vmatprep.mubr.f32.mxu0 0.0
      %1191 = vmatmul.mubr.f32.gmra.mrb[0].mxu0 %v472
      %v1192 = vpop.f32.mrb[0].mxu0
      %v1193 = vadd.f32 %v1107, %v1192
      %v1194 = vpop.f32.mrb[0].mxu0
      %v1195 = vadd.f32 %v1111, %v1194
      %1196 = vmatprep.mubr.f32.mxu0 0.0
      %1197 = vmatmul.mubr.f32.gmra.mrb[0].mxu0 %v473
      %v1198 = vpop.f32.mrb[0].mxu0
      %v1199 = vadd.f32 %v1107, %v1198
      %v1200 = vpop.f32.mrb[0].mxu0
      %v1201 = vadd.f32 %v1111, %v1200
      %1202 = vdwg.mxu0
      %v1203 = vmax.f32 %v1181, 0.0
      %v1204 = vmax.f32 %v1183, 0.0
      %v1205 = vmax.f32 %v1187, 0.0
      %v1206 = vmax.f32 %v1189, 0.0
      %v1207 = vmax.f32 %v1193, 0.0
      %v1208 = vmax.f32 %v1195, 0.0
      %v1209 = vmax.f32 %v1199, 0.0
      %v1210 = vmax.f32 %v1201, 0.0
      %s1211 = scalar_lea.vmem %s4, 256
      %v1212 = vld [vmem:[%s1211] sm:$0xff]
      %v1213 = vld [vmem:[%s1211 + $0x8] sm:$0xff]
      %v1214 = vld [vmem:[%s1211 + $0x10] sm:$0xff]
      %v1215 = vld [vmem:[%s1211 + $0x18] sm:$0xff]
      %v1216 = vld [vmem:[%s1211 + $0x20] sm:$0xff]
      %v1217 = vld [vmem:[%s1211 + $0x28] sm:$0xff]
      %v1218 = vld [vmem:[%s1211 + $0x30] sm:$0xff]
      %v1219 = vld [vmem:[%s1211 + $0x38] sm:$0xff]
      %v1220 = vld [vmem:[%s1211 + $0x40] sm:$0xff]
      %v1221 = vld [vmem:[%s1211 + $0x48] sm:$0xff]
      %v1222 = vld [vmem:[%s1211 + $0x50] sm:$0xff]
      %v1223 = vld [vmem:[%s1211 + $0x58] sm:$0xff]
      %v1224 = vld [vmem:[%s1211 + $0x60] sm:$0xff]
      %v1225 = vld [vmem:[%s1211 + $0x68] sm:$0xff]
      %v1226 = vld [vmem:[%s1211 + $0x70] sm:$0xff]
      %v1227 = vld [vmem:[%s1211 + $0x78] sm:$0xff]
      %v1228 = vld [vmem:[%s1211 + $0x80] sm:$0xff]
      %v1229 = vld [vmem:[%s1211 + $0x88] sm:$0xff]
      %v1230 = vld [vmem:[%s1211 + $0x90] sm:$0xff]
      %v1231 = vld [vmem:[%s1211 + $0x98] sm:$0xff]
      %v1232 = vld [vmem:[%s1211 + $0xa0] sm:$0xff]
      %v1233 = vld [vmem:[%s1211 + $0xa8] sm:$0xff]
      %v1234 = vld [vmem:[%s1211 + $0xb0] sm:$0xff]
      %v1235 = vld [vmem:[%s1211 + $0xb8] sm:$0xff]
      %v1236 = vld [vmem:[%s1211 + $0xc0] sm:$0xff]
      %v1237 = vld [vmem:[%s1211 + $0xc8] sm:$0xff]
      %v1238 = vld [vmem:[%s1211 + $0xd0] sm:$0xff]
      %v1239 = vld [vmem:[%s1211 + $0xd8] sm:$0xff]
      %v1240 = vld [vmem:[%s1211 + $0xe0] sm:$0xff]
      %v1241 = vld [vmem:[%s1211 + $0xe8] sm:$0xff]
      %v1242 = vld [vmem:[%s1211 + $0xf0] sm:$0xff]
      %v1243 = vld [vmem:[%s1211 + $0xf8] sm:$0xff]
      %s1244 = scalar_lea.vmem %s5, 1
      %v1245 = vld [vmem:[%s1244] sm:$0x1]
      %v1247 = vlaneseq
      %v1248 = vshrl.u32 %v1247, 7
      %v1249 = vsub.s32 0, %v1248
      %v1250 = vrot.slane %v1245, %v1249
      %1252 = vmatprep.subr.mxu0 0.0
      %1253 = vmatpush1.msra.mxu0 %v1212
      %1254 = vmatprep.subr.mxu0 0.0
      %1255 = vmatpush1.msra.mxu0 %v1213
      %1256 = vmatprep.subr.mxu0 0.0
      %1257 = vmatpush1.msra.mxu0 %v1214
      %1258 = vmatprep.subr.mxu0 0.0
      %1259 = vmatpush1.msra.mxu0 %v1215
      %1260 = vmatprep.subr.mxu0 0.0
      %1261 = vmatpush1.msra.mxu0 %v1216
      %1262 = vmatprep.subr.mxu0 0.0
      %1263 = vmatpush1.msra.mxu0 %v1217
      %1264 = vmatprep.subr.mxu0 0.0
      %1265 = vmatpush1.msra.mxu0 %v1218
      %1266 = vmatprep.subr.mxu0 0.0
      %1267 = vmatpush1.msra.mxu0 %v1219
      %1268 = vmatprep.subr.mxu0 0.0
      %1269 = vmatpush1.msra.mxu0 %v1220
      %1270 = vmatprep.subr.mxu0 0.0
      %1271 = vmatpush1.msra.mxu0 %v1221
      %1272 = vmatprep.subr.mxu0 0.0
      %1273 = vmatpush1.msra.mxu0 %v1222
      %1274 = vmatprep.subr.mxu0 0.0
      %1275 = vmatpush1.msra.mxu0 %v1223
      %1276 = vmatprep.subr.mxu0 0.0
      %1277 = vmatpush1.msra.mxu0 %v1224
      %1278 = vmatprep.subr.mxu0 0.0
      %1279 = vmatpush1.msra.mxu0 %v1225
      %1280 = vmatprep.subr.mxu0 0.0
      %1281 = vmatpush1.msra.mxu0 %v1226
      %1282 = vmatprep.subr.mxu0 0.0
      %1283 = vmatpush1.msra.mxu0 %v1227
      %1284 = vmatprep.subr.mxu0 0.0
      %1285 = vmatpush1.msra.mxu0 %v1228
      %1286 = vmatprep.subr.mxu0 0.0
      %1287 = vmatpush1.msra.mxu0 %v1229
      %1288 = vmatprep.subr.mxu0 0.0
      %1289 = vmatpush1.msra.mxu0 %v1230
      %1290 = vmatprep.subr.mxu0 0.0
      %1291 = vmatpush1.msra.mxu0 %v1231
      %1292 = vmatprep.subr.mxu0 0.0
      %1293 = vmatpush1.msra.mxu0 %v1232
      %1294 = vmatprep.subr.mxu0 0.0
      %1295 = vmatpush1.msra.mxu0 %v1233
      %1296 = vmatprep.subr.mxu0 0.0
      %1297 = vmatpush1.msra.mxu0 %v1234
      %1298 = vmatprep.subr.mxu0 0.0
      %1299 = vmatpush1.msra.mxu0 %v1235
      %1300 = vmatprep.subr.mxu0 0.0
      %1301 = vmatpush1.msra.mxu0 %v1236
      %1302 = vmatprep.subr.mxu0 0.0
      %1303 = vmatpush1.msra.mxu0 %v1237
      %1304 = vmatprep.subr.mxu0 0.0
      %1305 = vmatpush1.msra.mxu0 %v1238
      %1306 = vmatprep.subr.mxu0 0.0
      %1307 = vmatpush1.msra.mxu0 %v1239
      %1308 = vmatprep.subr.mxu0 0.0
      %1309 = vmatpush1.msra.mxu0 %v1240
      %1310 = vmatprep.subr.mxu0 0.0
      %1311 = vmatpush1.msra.mxu0 %v1241
      %1312 = vmatprep.subr.mxu0 0.0
      %1313 = vmatpush1.msra.mxu0 %v1242
      %1314 = vmatprep.subr.mxu0 0.0
      %1315 = vmatpush1.msra.mxu0 %v1243
      %1316 = vmatprep.mubr.f32.mxu0 %v1204
      %1317 = vmatmul.mubr.f32.gmra.mrb[0].mxu0 %v1203
      %v1318 = vpop.f32.mrb[0].mxu0
      %v1319 = vadd.f32 %v1250, %v1318
      %v1320 = vpop.f32.mrb[0].mxu0
      %1321 = vmatprep.mubr.f32.mxu0 %v1206
      %1322 = vmatmul.mubr.f32.gmra.mrb[0].mxu0 %v1205
      %v1323 = vpop.f32.mrb[0].mxu0
      %v1324 = vadd.f32 %v1250, %v1323
      %v1325 = vpop.f32.mrb[0].mxu0
      %1326 = vmatprep.mubr.f32.mxu0 %v1208
      %1327 = vmatmul.mubr.f32.gmra.mrb[0].mxu0 %v1207
      %v1328 = vpop.f32.mrb[0].mxu0
      %v1329 = vadd.f32 %v1250, %v1328
      %v1330 = vpop.f32.mrb[0].mxu0
      %1331 = vmatprep.mubr.f32.mxu0 %v1210
      %1332 = vmatmul.mubr.f32.gmra.mrb[0].mxu0 %v1209
      %v1333 = vpop.f32.mrb[0].mxu0
      %v1334 = vadd.f32 %v1250, %v1333
      %v1335 = vpop.f32.mrb[0].mxu0
      %1336 = vdwg.mxu0
      %v1337 = vmax.f32 %v1319, 0.0
      %v1338 = vmax.f32 %v1324, 0.0
      %v1339 = vmax.f32 %v1329, 0.0
      %v1340 = vmax.f32 %v1334, 0.0
      %s1341 = scalar_lea.vmem %s6, 256
      %v1342 = vld [vmem:[%s1341] sm:$0xff]
      %v1343 = vld [vmem:[%s1341 + $0x8] sm:$0xff]
      %v1344 = vld [vmem:[%s1341 + $0x10] sm:$0xff]
      %v1345 = vld [vmem:[%s1341 + $0x18] sm:$0xff]
      %v1346 = vld [vmem:[%s1341 + $0x20] sm:$0xff]
      %v1347 = vld [vmem:[%s1341 + $0x28] sm:$0xff]
      %v1348 = vld [vmem:[%s1341 + $0x30] sm:$0xff]
      %v1349 = vld [vmem:[%s1341 + $0x38] sm:$0xff]
      %v1350 = vld [vmem:[%s1341 + $0x40] sm:$0xff]
      %v1351 = vld [vmem:[%s1341 + $0x48] sm:$0xff]
      %v1352 = vld [vmem:[%s1341 + $0x50] sm:$0xff]
      %v1353 = vld [vmem:[%s1341 + $0x58] sm:$0xff]
      %v1354 = vld [vmem:[%s1341 + $0x60] sm:$0xff]
      %v1355 = vld [vmem:[%s1341 + $0x68] sm:$0xff]
      %v1356 = vld [vmem:[%s1341 + $0x70] sm:$0xff]
      %v1357 = vld [vmem:[%s1341 + $0x78] sm:$0xff]
      %v1358 = vld [vmem:[%s1341 + $0x80] sm:$0xff]
      %v1359 = vld [vmem:[%s1341 + $0x88] sm:$0xff]
      %v1360 = vld [vmem:[%s1341 + $0x90] sm:$0xff]
      %v1361 = vld [vmem:[%s1341 + $0x98] sm:$0xff]
      %v1362 = vld [vmem:[%s1341 + $0xa0] sm:$0xff]
      %v1363 = vld [vmem:[%s1341 + $0xa8] sm:$0xff]
      %v1364 = vld [vmem:[%s1341 + $0xb0] sm:$0xff]
      %v1365 = vld [vmem:[%s1341 + $0xb8] sm:$0xff]
      %v1366 = vld [vmem:[%s1341 + $0xc0] sm:$0xff]
      %v1367 = vld [vmem:[%s1341 + $0xc8] sm:$0xff]
      %v1368 = vld [vmem:[%s1341 + $0xd0] sm:$0xff]
      %v1369 = vld [vmem:[%s1341 + $0xd8] sm:$0xff]
      %v1370 = vld [vmem:[%s1341 + $0xe0] sm:$0xff]
      %v1371 = vld [vmem:[%s1341 + $0xe8] sm:$0xff]
      %v1372 = vld [vmem:[%s1341 + $0xf0] sm:$0xff]
      %v1373 = vld [vmem:[%s1341 + $0xf8] sm:$0xff]
      %s1374 = scalar_lea.vmem %s7, 2
      %v1375 = vld [vmem:[%s1374] sm:$0x3]
      %v1377 = vlaneseq
      %v1378 = vshrl.u32 %v1377, 7
      %v1379 = vsub.s32 0, %v1378
      %v1380 = vrot.slane %v1375, %v1379
      %v1381 = vlaneseq
      %v1382 = vshrl.u32 %v1381, 7
      %v1383 = vsub.s32 1, %v1382
      %v1384 = vrot.slane %v1375, %v1383
      %1387 = vmatprep.subr.mxu0 %v1343
      %1388 = vmatpush1.msra.mxu0 %v1342
      %1389 = vmatprep.subr.mxu0 %v1345
      %1390 = vmatpush1.msra.mxu0 %v1344
      %1391 = vmatprep.subr.mxu0 %v1347
      %1392 = vmatpush1.msra.mxu0 %v1346
      %1393 = vmatprep.subr.mxu0 %v1349
      %1394 = vmatpush1.msra.mxu0 %v1348
      %1395 = vmatprep.subr.mxu0 %v1351
      %1396 = vmatpush1.msra.mxu0 %v1350
      %1397 = vmatprep.subr.mxu0 %v1353
      %1398 = vmatpush1.msra.mxu0 %v1352
      %1399 = vmatprep.subr.mxu0 %v1355
      %1400 = vmatpush1.msra.mxu0 %v1354
      %1401 = vmatprep.subr.mxu0 %v1357
      %1402 = vmatpush1.msra.mxu0 %v1356
      %1403 = vmatprep.subr.mxu0 %v1359
      %1404 = vmatpush1.msra.mxu0 %v1358
      %1405 = vmatprep.subr.mxu0 %v1361
      %1406 = vmatpush1.msra.mxu0 %v1360
      %1407 = vmatprep.subr.mxu0 %v1363
      %1408 = vmatpush1.msra.mxu0 %v1362
      %1409 = vmatprep.subr.mxu0 %v1365
      %1410 = vmatpush1.msra.mxu0 %v1364
      %1411 = vmatprep.subr.mxu0 %v1367
      %1412 = vmatpush1.msra.mxu0 %v1366
      %1413 = vmatprep.subr.mxu0 %v1369
      %1414 = vmatpush1.msra.mxu0 %v1368
      %1415 = vmatprep.subr.mxu0 %v1371
      %1416 = vmatpush1.msra.mxu0 %v1370
      %1417 = vmatprep.subr.mxu0 %v1373
      %1418 = vmatpush1.msra.mxu0 %v1372
      %1419 = vmatprep.subr.mxu0 0.0
      %1420 = vmatpush1.msra.mxu0 0.0
      %1421 = vmatprep.subr.mxu0 0.0
      %1422 = vmatpush1.msra.mxu0 0.0
      %1423 = vmatprep.subr.mxu0 0.0
      %1424 = vmatpush1.msra.mxu0 0.0
      %1425 = vmatprep.subr.mxu0 0.0
      %1426 = vmatpush1.msra.mxu0 0.0
      %1427 = vmatprep.subr.mxu0 0.0
      %1428 = vmatpush1.msra.mxu0 0.0
      %1429 = vmatprep.subr.mxu0 0.0
      %1430 = vmatpush1.msra.mxu0 0.0
      %1431 = vmatprep.subr.mxu0 0.0
      %1432 = vmatpush1.msra.mxu0 0.0
      %1433 = vmatprep.subr.mxu0 0.0
      %1434 = vmatpush1.msra.mxu0 0.0
      %1435 = vmatprep.subr.mxu0 0.0
      %1436 = vmatpush1.msra.mxu0 0.0
      %1437 = vmatprep.subr.mxu0 0.0
      %1438 = vmatpush1.msra.mxu0 0.0
      %1439 = vmatprep.subr.mxu0 0.0
      %1440 = vmatpush1.msra.mxu0 0.0
      %1441 = vmatprep.subr.mxu0 0.0
      %1442 = vmatpush1.msra.mxu0 0.0
      %1443 = vmatprep.subr.mxu0 0.0
      %1444 = vmatpush1.msra.mxu0 0.0
      %1445 = vmatprep.subr.mxu0 0.0
      %1446 = vmatpush1.msra.mxu0 0.0
      %1447 = vmatprep.subr.mxu0 0.0
      %1448 = vmatpush1.msra.mxu0 0.0
      %1449 = vmatprep.subr.mxu0 0.0
      %1450 = vmatpush1.msra.mxu0 0.0
      %1451 = vmatprep.mubr.f32.mxu0 0.0
      %1452 = vmatmul.mubr.f32.gmra.mrb[0].mxu0 %v474
      %v1453 = vpop.f32.mrb[0].mxu0
      %v1454 = vadd.f32 %v1380, %v1453
      %v1455 = vpop.f32.mrb[0].mxu0
      %v1456 = vadd.f32 %v1384, %v1455
      %1457 = vmatprep.mubr.f32.mxu0 0.0
      %1458 = vmatmul.mubr.f32.gmra.mrb[0].mxu0 %v475
      %v1459 = vpop.f32.mrb[0].mxu0
      %v1460 = vadd.f32 %v1380, %v1459
      %v1461 = vpop.f32.mrb[0].mxu0
      %v1462 = vadd.f32 %v1384, %v1461
      %1463 = vmatprep.mubr.f32.mxu0 0.0
      %1464 = vmatmul.mubr.f32.gmra.mrb[0].mxu0 %v476
      %v1465 = vpop.f32.mrb[0].mxu0
      %v1466 = vadd.f32 %v1380, %v1465
      %v1467 = vpop.f32.mrb[0].mxu0
      %v1468 = vadd.f32 %v1384, %v1467
      %1469 = vmatprep.mubr.f32.mxu0 0.0
      %1470 = vmatmul.mubr.f32.gmra.mrb[0].mxu0 %v477
      %v1471 = vpop.f32.mrb[0].mxu0
      %v1472 = vadd.f32 %v1380, %v1471
      %v1473 = vpop.f32.mrb[0].mxu0
      %v1474 = vadd.f32 %v1384, %v1473
      %1475 = vdwg.mxu0
      %v1476 = vmax.f32 %v1454, 0.0
      %v1477 = vmax.f32 %v1456, 0.0
      %v1478 = vmax.f32 %v1460, 0.0
      %v1479 = vmax.f32 %v1462, 0.0
      %v1480 = vmax.f32 %v1466, 0.0
      %v1481 = vmax.f32 %v1468, 0.0
      %v1482 = vmax.f32 %v1472, 0.0
      %v1483 = vmax.f32 %v1474, 0.0
      %s1484 = scalar_lea.vmem %s8, 256
      %v1485 = vld [vmem:[%s1484] sm:$0xff]
      %v1486 = vld [vmem:[%s1484 + $0x8] sm:$0xff]
      %v1487 = vld [vmem:[%s1484 + $0x10] sm:$0xff]
      %v1488 = vld [vmem:[%s1484 + $0x18] sm:$0xff]
      %v1489 = vld [vmem:[%s1484 + $0x20] sm:$0xff]
      %v1490 = vld [vmem:[%s1484 + $0x28] sm:$0xff]
      %v1491 = vld [vmem:[%s1484 + $0x30] sm:$0xff]
      %v1492 = vld [vmem:[%s1484 + $0x38] sm:$0xff]
      %v1493 = vld [vmem:[%s1484 + $0x40] sm:$0xff]
      %v1494 = vld [vmem:[%s1484 + $0x48] sm:$0xff]
      %v1495 = vld [vmem:[%s1484 + $0x50] sm:$0xff]
      %v1496 = vld [vmem:[%s1484 + $0x58] sm:$0xff]
      %v1497 = vld [vmem:[%s1484 + $0x60] sm:$0xff]
      %v1498 = vld [vmem:[%s1484 + $0x68] sm:$0xff]
      %v1499 = vld [vmem:[%s1484 + $0x70] sm:$0xff]
      %v1500 = vld [vmem:[%s1484 + $0x78] sm:$0xff]
      %v1501 = vld [vmem:[%s1484 + $0x80] sm:$0xff]
      %v1502 = vld [vmem:[%s1484 + $0x88] sm:$0xff]
      %v1503 = vld [vmem:[%s1484 + $0x90] sm:$0xff]
      %v1504 = vld [vmem:[%s1484 + $0x98] sm:$0xff]
      %v1505 = vld [vmem:[%s1484 + $0xa0] sm:$0xff]
      %v1506 = vld [vmem:[%s1484 + $0xa8] sm:$0xff]
      %v1507 = vld [vmem:[%s1484 + $0xb0] sm:$0xff]
      %v1508 = vld [vmem:[%s1484 + $0xb8] sm:$0xff]
      %v1509 = vld [vmem:[%s1484 + $0xc0] sm:$0xff]
      %v1510 = vld [vmem:[%s1484 + $0xc8] sm:$0xff]
      %v1511 = vld [vmem:[%s1484 + $0xd0] sm:$0xff]
      %v1512 = vld [vmem:[%s1484 + $0xd8] sm:$0xff]
      %v1513 = vld [vmem:[%s1484 + $0xe0] sm:$0xff]
      %v1514 = vld [vmem:[%s1484 + $0xe8] sm:$0xff]
      %v1515 = vld [vmem:[%s1484 + $0xf0] sm:$0xff]
      %v1516 = vld [vmem:[%s1484 + $0xf8] sm:$0xff]
      %s1517 = scalar_lea.vmem %s9, 1
      %v1518 = vld [vmem:[%s1517] sm:$0x1]
      %v1520 = vlaneseq
      %v1521 = vshrl.u32 %v1520, 7
      %v1522 = vsub.s32 0, %v1521
      %v1523 = vrot.slane %v1518, %v1522
      %1525 = vmatprep.subr.mxu0 0.0
      %1526 = vmatpush1.msra.mxu0 %v1485
      %1527 = vmatprep.subr.mxu0 0.0
      %1528 = vmatpush1.msra.mxu0 %v1486
      %1529 = vmatprep.subr.mxu0 0.0
      %1530 = vmatpush1.msra.mxu0 %v1487
      %1531 = vmatprep.subr.mxu0 0.0
      %1532 = vmatpush1.msra.mxu0 %v1488
      %1533 = vmatprep.subr.mxu0 0.0
      %1534 = vmatpush1.msra.mxu0 %v1489
      %1535 = vmatprep.subr.mxu0 0.0
      %1536 = vmatpush1.msra.mxu0 %v1490
      %1537 = vmatprep.subr.mxu0 0.0
      %1538 = vmatpush1.msra.mxu0 %v1491
      %1539 = vmatprep.subr.mxu0 0.0
      %1540 = vmatpush1.msra.mxu0 %v1492
      %1541 = vmatprep.subr.mxu0 0.0
      %1542 = vmatpush1.msra.mxu0 %v1493
      %1543 = vmatprep.subr.mxu0 0.0
      %1544 = vmatpush1.msra.mxu0 %v1494
      %1545 = vmatprep.subr.mxu0 0.0
      %1546 = vmatpush1.msra.mxu0 %v1495
      %1547 = vmatprep.subr.mxu0 0.0
      %1548 = vmatpush1.msra.mxu0 %v1496
      %1549 = vmatprep.subr.mxu0 0.0
      %1550 = vmatpush1.msra.mxu0 %v1497
      %1551 = vmatprep.subr.mxu0 0.0
      %1552 = vmatpush1.msra.mxu0 %v1498
      %1553 = vmatprep.subr.mxu0 0.0
      %1554 = vmatpush1.msra.mxu0 %v1499
      %1555 = vmatprep.subr.mxu0 0.0
      %1556 = vmatpush1.msra.mxu0 %v1500
      %1557 = vmatprep.subr.mxu0 0.0
      %1558 = vmatpush1.msra.mxu0 %v1501
      %1559 = vmatprep.subr.mxu0 0.0
      %1560 = vmatpush1.msra.mxu0 %v1502
      %1561 = vmatprep.subr.mxu0 0.0
      %1562 = vmatpush1.msra.mxu0 %v1503
      %1563 = vmatprep.subr.mxu0 0.0
      %1564 = vmatpush1.msra.mxu0 %v1504
      %1565 = vmatprep.subr.mxu0 0.0
      %1566 = vmatpush1.msra.mxu0 %v1505
      %1567 = vmatprep.subr.mxu0 0.0
      %1568 = vmatpush1.msra.mxu0 %v1506
      %1569 = vmatprep.subr.mxu0 0.0
      %1570 = vmatpush1.msra.mxu0 %v1507
      %1571 = vmatprep.subr.mxu0 0.0
      %1572 = vmatpush1.msra.mxu0 %v1508
      %1573 = vmatprep.subr.mxu0 0.0
      %1574 = vmatpush1.msra.mxu0 %v1509
      %1575 = vmatprep.subr.mxu0 0.0
      %1576 = vmatpush1.msra.mxu0 %v1510
      %1577 = vmatprep.subr.mxu0 0.0
      %1578 = vmatpush1.msra.mxu0 %v1511
      %1579 = vmatprep.subr.mxu0 0.0
      %1580 = vmatpush1.msra.mxu0 %v1512
      %1581 = vmatprep.subr.mxu0 0.0
      %1582 = vmatpush1.msra.mxu0 %v1513
      %1583 = vmatprep.subr.mxu0 0.0
      %1584 = vmatpush1.msra.mxu0 %v1514
      %1585 = vmatprep.subr.mxu0 0.0
      %1586 = vmatpush1.msra.mxu0 %v1515
      %1587 = vmatprep.subr.mxu0 0.0
      %1588 = vmatpush1.msra.mxu0 %v1516
      %1589 = vmatprep.mubr.f32.mxu0 %v1477
      %1590 = vmatmul.mubr.f32.gmra.mrb[0].mxu0 %v1476
      %v1591 = vpop.f32.mrb[0].mxu0
      %v1592 = vadd.f32 %v1523, %v1591
      %v1593 = vpop.f32.mrb[0].mxu0
      %1594 = vmatprep.mubr.f32.mxu0 %v1479
      %1595 = vmatmul.mubr.f32.gmra.mrb[0].mxu0 %v1478
      %v1596 = vpop.f32.mrb[0].mxu0
      %v1597 = vadd.f32 %v1523, %v1596
      %v1598 = vpop.f32.mrb[0].mxu0
      %1599 = vmatprep.mubr.f32.mxu0 %v1481
      %1600 = vmatmul.mubr.f32.gmra.mrb[0].mxu0 %v1480
      %v1601 = vpop.f32.mrb[0].mxu0
      %v1602 = vadd.f32 %v1523, %v1601
      %v1603 = vpop.f32.mrb[0].mxu0
      %1604 = vmatprep.mubr.f32.mxu0 %v1483
      %1605 = vmatmul.mubr.f32.gmra.mrb[0].mxu0 %v1482
      %v1606 = vpop.f32.mrb[0].mxu0
      %v1607 = vadd.f32 %v1523, %v1606
      %v1608 = vpop.f32.mrb[0].mxu0
      %1609 = vdwg.mxu0
      %v1610 = vmax.f32 %v1592, 0.0
      %v1611 = vmax.f32 %v1597, 0.0
      %v1612 = vmax.f32 %v1602, 0.0
      %v1613 = vmax.f32 %v1607, 0.0
      %v1614 = vpack.c.bf16 %v1338, %v1337
      %v1615 = vpack.c.bf16 %v1340, %v1339
      %v1618 = vunpack.c.l.b16 %v1614
      %v1619 = vunpack.c.h.b16 %v1614
      %v1620 = vunpack.c.l.b16 %v1615
      %v1621 = vunpack.c.h.b16 %v1615
      %v1622 = vpack.c.b16 %v1618, %v1618
      %v1623 = vpack.c.b16 %v1619, %v1619
      %v1624 = vpack.c.b16 %v1620, %v1620
      %v1625 = vpack.c.b16 %v1621, %v1621
      %1630 = vst [vmem:[%s461 + $0x4] sm:$0xf] %v1622
      %1631 = vst [vmem:[%s461 + $0xc] sm:$0xf] %v1623
      %1632 = vst [vmem:[%s461 + $0x14] sm:$0xf] %v1624
      %1633 = vst [vmem:[%s461 + $0x1c] sm:$0xf] %v1625
      %v1634 = vpack.c.bf16 %v1611, %v1610
      %v1635 = vpack.c.bf16 %v1613, %v1612
      %v1638 = vunpack.c.l.b16 %v1634
      %v1639 = vunpack.c.h.b16 %v1634
      %v1640 = vunpack.c.l.b16 %v1635
      %v1641 = vunpack.c.h.b16 %v1635
      %v1642 = vpack.c.b16 %v1638, %v1638
      %v1643 = vpack.c.b16 %v1639, %v1639
      %v1644 = vpack.c.b16 %v1640, %v1640
      %v1645 = vpack.c.b16 %v1641, %v1641
      %1650 = vst [vmem:[%s468 + $0x4] sm:$0xf] %v1642
      %1651 = vst [vmem:[%s468 + $0xc] sm:$0xf] %v1643
      %1652 = vst [vmem:[%s468 + $0x14] sm:$0xf] %v1644
      %1653 = vst [vmem:[%s468 + $0x1c] sm:$0xf] %v1645
      %v1654 = vmul.f32 %v1337, %v1610
      %v1655 = vmul.f32 %v1338, %v1611
      %v1656 = vmul.f32 %v1339, %v1612
      %v1657 = vmul.f32 %v1340, %v1613
      %1658 = vadd.xlane.f32.xlu0 %v1654
      %v1659 = vpop.xlane.xlu0 %1658
      %1660 = vadd.xlane.f32.xlu0 %v1655
      %v1661 = vpop.xlane.xlu0 %1660
      %1662 = vadd.xlane.f32.xlu0 %v1656
      %v1663 = vpop.xlane.xlu0 %1662
      %1664 = vadd.xlane.f32.xlu0 %v1657
      %v1665 = vpop.xlane.xlu0 %1664
      %vm1666 = vcmask 7168
      %v1667 = vsel %vm1666, %v1061, %v1659
      %v1668 = vsel %vm1666, %v1063, %v1661
      %v1669 = vsel %vm1666, %v1065, %v1663
      %v1670 = vsel %vm1666, %v1067, %v1665
      %vm1671 = vcmask 15360
      %1672 = vst.msk [vmem:[%s454] sm:$0xff] %vm1671, %v1667
      %1673 = vst.msk [vmem:[%s454 + $0x8] sm:$0xff] %vm1671, %v1668
      %1674 = vst.msk [vmem:[%s454 + $0x10] sm:$0xff] %vm1671, %v1669
      %1675 = vst.msk [vmem:[%s454 + $0x18] sm:$0xff] %vm1671, %v1670
      %s1676 = smul.u32 4, %s24
      %p1677 = scmp.lt.s32.totalorder %s1676, 7
      %s1678 = scalar_select %p1677, %s1676, 7
      %s1679 = smul.addr %s1678, 8
      %s1680 = scalar_lea.vmem %s10, %s1679
      %s1681 = smul.u32 4, %s24
      %p1682 = scmp.lt.s32.totalorder %s1681, 7
      %s1683 = scalar_select %p1682, %s1681, 7
      %s1684 = smul.addr %s1683, 2
      %s1685 = smul.addr %s1684, 4
      %s1686 = scalar_lea.vmem %s11, %s1685
      %s1687 = smul.u32 4, %s24
      %p1688 = scmp.lt.s32.totalorder %s1687, 7
      %s1689 = scalar_select %p1688, %s1687, 7
      %s1690 = smul.addr %s1689, 2
      %s1691 = smul.addr %s1690, 4
      %s1692 = scalar_lea.vmem %s12, %s1691
      // Predicated region
      $region61: #{dssm_forward.1} parent=59 // pred_check
        %p1693 = pneg %p262
      $region62: #{dssm_forward.1} parent=59 // pred_check_branch
        %1695 = sbr.rel (%p1693) target = $region64
      $region63: #{dssm_forward.1} parent=59 // pred_region
        %s1696 = smul.u32 4, %s24
      $region64: #{dssm_forward.1} parent=59 // pred_fallthru
        _
      // Predicated region
      $region65: #{dssm_forward.1} parent=59 // pred_check
        %p1697 = pneg %p288
      $region66: #{dssm_forward.1} parent=59 // pred_check_branch
        %1699 = sbr.rel (%p1697) target = $region68
      $region67: #{dssm_forward.1} parent=59 // pred_region
        %s1700 = smul.u32 4, %s24
      $region68: #{dssm_forward.1} parent=59 // pred_fallthru
        _
      // Predicated region
      $region69: #{dssm_forward.1} parent=59 // pred_check
        %p1701 = pneg %p314
      $region70: #{dssm_forward.1} parent=59 // pred_check_branch
        %1703 = sbr.rel (%p1701) target = $region72
      $region71: #{dssm_forward.1} parent=59 // pred_region
        %s1704 = smul.u32 4, %s24
      $region72: #{dssm_forward.1} parent=59 // pred_fallthru
        _
    $region60: #{dssm_forward.1} parent=5 // pred_fallthru
      _
    %p1705 = scmp.le.s32.totalorder 2, %s19
    // Predicated region
    $region73: #{dssm_forward.1} parent=5 // pred_check
      %p1706 = pneg %p1705
    $region74: #{dssm_forward.1} parent=5 // pred_check_branch
      %1708 = sbr.rel (%p1706) target = $region76
    $region75: #{dssm_forward.1} parent=5 // pred_region
      %s1709 = ssub.s32 %s19, 2
      // Predicated region
      $region77: #{dssm_forward.1} parent=75 // pred_check
        %p1710 = pneg %p268
      $region78: #{dssm_forward.1} parent=75 // pred_check_branch
        %1712 = sbr.rel (%p1710) target = $region80
      $region79: #{dssm_forward.1} parent=75 // pred_region
        %s1713 = smul.u32 4, %s25
        %p1714 = scmp.lt.s32.totalorder %s1713, 7
        %s1715 = scalar_select %p1714, %s1713, 7
        %s1716 = smul.addr %s1715, 8
        %s1717 = scalar_lea.vmem %s10, %s1716
      $region80: #{dssm_forward.1} parent=75 // pred_fallthru
        _
      // Predicated region
      $region81: #{dssm_forward.1} parent=75 // pred_check
        %p1718 = pneg %p294
      $region82: #{dssm_forward.1} parent=75 // pred_check_branch
        %1720 = sbr.rel (%p1718) target = $region84
      $region83: #{dssm_forward.1} parent=75 // pred_region
        %s1721 = smul.u32 4, %s25
        %p1722 = scmp.lt.s32.totalorder %s1721, 7
        %s1723 = scalar_select %p1722, %s1721, 7
        %s1724 = smul.addr %s1723, 2
        %s1725 = smul.addr %s1724, 4
        %s1726 = scalar_lea.vmem %s11, %s1725
      $region84: #{dssm_forward.1} parent=75 // pred_fallthru
        _
      // Predicated region
      $region85: #{dssm_forward.1} parent=75 // pred_check
        %p1727 = pneg %p320
      $region86: #{dssm_forward.1} parent=75 // pred_check_branch
        %1729 = sbr.rel (%p1727) target = $region88
      $region87: #{dssm_forward.1} parent=75 // pred_region
        %s1730 = smul.u32 4, %s25
        %p1731 = scmp.lt.s32.totalorder %s1730, 7
        %s1732 = scalar_select %p1731, %s1730, 7
        %s1733 = smul.addr %s1732, 2
        %s1734 = smul.addr %s1733, 4
        %s1735 = scalar_lea.vmem %s12, %s1734
      $region88: #{dssm_forward.1} parent=75 // pred_fallthru
        _
    $region76: #{dssm_forward.1} parent=5 // pred_fallthru
      _
  $region6: #{dssm_forward.1} parent=0 // loop_footer
    %s23 = sadd.s32 1, %s19
  $region7: #{dssm_forward.1} parent=0 // loop_footer_branch
    %18 = sbr.rel target = $region3
  $region8: #{dssm_forward.1} parent=0 // loop_exit
    _

</llo_original>
